<compile_context>
chip_gen: v7x
topology: tpu7x:2x2x1
jax: 0.10.0
libtpu: 0.0.40
codegen_flags: <defaults>
</compile_context>

<pallas_src>
import functools

import jax
import jax.numpy as jnp
from jax.experimental import pallas as pl
from jax.experimental.pallas import tpu as pltpu


def _round_up(x, m):
    return (x + m - 1) // m * m


def _segment_dims(i, num_layers, feature_sizes):
    """Feature widths of layer i's concatenated input segments (torch order)."""
    fs = feature_sizes
    if i < num_layers // 2:
        return [fs[i]]
    if i == num_layers // 2:
        return [fs[i], fs[num_layers - i - 1]]
    return [fs[i], fs[num_layers - i], fs[num_layers - i - 1]]


# -----------------------------------------------------------------------------
# Fused Pallas kernel: the entire pyramid forward for a block of batch elems.
# -----------------------------------------------------------------------------
def _pyramid_kernel(meta, nodes_ref, adj_ref, w_ref, b_ref, out_ref):
    """meta[i] = (dout_i, (w_row_offset per input segment,), bias_row_i).

      nodes_ref : (Bblk, N, F0)
      adj_ref   : (Bblk, N, N)
      w_ref     : (Wrows, Wcols)  all layers' update-composed projection weights
      b_ref     : (Brows, Wcols)  row i = layer i's composed bias [src|self|dst]
      out_ref   : (Bblk, N, Dout_last)
    """
    num_layers = len(meta)
    f32 = jnp.float32
    eps_sq = f32(1e-24)  # (F.normalize eps = 1e-12) ** 2

    bblk, n, f0 = nodes_ref.shape

    # --- adjacency normalisation, hoisted out of the layer loop -------------
    # a_stack[b] = [ D_r A_b ; (D_c A_b)^T ]  (2N, N): one matmul per layer per
    # batch element computes BOTH normalised aggregations at once.
    adj = adj_ref[...]
    a_stacks = []
    for b in range(bblk):
        a = adj[b]
        inv_row = jax.lax.rsqrt(
            jnp.maximum(jnp.sum(a * a, axis=1, keepdims=True), eps_sq))  # (N,1)
        inv_col = jax.lax.rsqrt(
            jnp.maximum(jnp.sum(a * a, axis=0, keepdims=True), eps_sq))  # (1,N)
        a_stacks.append(jnp.concatenate([a * inv_row, (a * inv_col).T], axis=0))

    # Activations for the whole block, flattened so projection matmuls present
    # Bblk*N rows to the MXU.
    fpass = nodes_ref[...].reshape(bblk * n, f0)

    stashed = []
    for i in range(num_layers):
        dout, w_offs, b_row = meta[i]
        w3 = 3 * dout

        # Pyramid skip connections: no lane concat of activations — split the
        # (update-composed) projection weight by input segment instead.
        if i < num_layers // 2:
            stashed.append(fpass)
            segs = [fpass]
        elif i == num_layers // 2:
            segs = [fpass, stashed[num_layers - i - 1]]
        else:
            segs = [fpass, stashed[num_layers - i], stashed[num_layers - i - 1]]

        # Packed, update-composed projection:
        #   P = x_cat @ [Wsrc@Wu_src | Wself@Wu_self | Wdst@Wu_dst] + b_comp
        p = None
        for seg, off in zip(segs, w_offs):
            d = seg.shape[1]
            t = jnp.dot(seg, w_ref[off:off + d, 0:w3],
                        preferred_element_type=f32)
            p = t if p is None else p + t
        p = p + b_ref[b_row:b_row + 1, 0:w3]                 # (Bblk*N, 3*Dout)

        # Per-batch-element aggregation (one fused matmul per element); the
        # GraphSage update is then three slice-adds — no update matmuls.
        upd_rows = []
        for b in range(bblk):
            pb = p[b * n:(b + 1) * n]                        # (N, 3*Dout)
            agg = jnp.dot(a_stacks[b], pb,
                          preferred_element_type=f32)        # (2N, 3*Dout)
            upd_rows.append(agg[:n, 0:dout]                  # src:  D_r A   @ P_src
                            + pb[:, dout:2 * dout]           # self: P_self (+bu)
                            + agg[n:, 2 * dout:w3])          # dst:  D_c A^T @ P_dst
        upd = jnp.concatenate(upd_rows, axis=0) if bblk > 1 else upd_rows[0]
        fpass = jnp.maximum(upd, 0.0)                        # ReLU

    out_ref[...] = fpass.reshape(bblk, n, meta[-1][0])


# -----------------------------------------------------------------------------
# Wrapper: compose/pack weights (plain-JAX glue) and launch one pallas_call.
# -----------------------------------------------------------------------------
def _pack_params(layer_params, f0):
    """Compose node_update into the projections; pack all layers into two flat
    zero-padded buffers with static 8-aligned per-segment row offsets."""
    num_layers = len(layer_params)
    fs = [f0] + [p[6].shape[1] for p in layer_params]

    wcomps, bcomps, douts = [], [], []
    for (wsrc, bsrc, wdst, bdst, wself, bself, wu, bu) in layer_params:
        r = wsrc.shape[1]
        wu_src, wu_self, wu_dst = wu[:r], wu[r:2 * r], wu[2 * r:]
        # concat(src,self,dst) @ Wu == src@Wu_src + self@Wu_self + dst@Wu_dst,
        # and aggregation is linear, so the update weight composes into the
        # projection: P_* = x @ (W_* Wu_*) + (b_* Wu_*).  bu joins the self
        # block (the only un-aggregated one).
        wcomps.append(jnp.concatenate(
            [wsrc @ wu_src, wself @ wu_self, wdst @ wu_dst], axis=1))
        bcomps.append(jnp.concatenate(
            [bsrc @ wu_src, bself @ wu_self + bu, bdst @ wu_dst]))
        douts.append(wu.shape[1])

    maxw = max(3 * d for d in douts)

    blocks, w_offsets, total = [], [], 0
    for i in range(num_layers):
        dims = _segment_dims(i, num_layers, fs)
        w, w3, row, offs = wcomps[i], 3 * douts[i], 0, []
        for d in dims:
            rows = _round_up(d, 8)          # keep kernel row slices 8-aligned
            blk = jnp.zeros((rows, maxw), jnp.float32)
            blk = blk.at[:d, :w3].set(w[row:row + d])
            blocks.append(blk)
            offs.append(total)
            total += rows
            row += d
        w_offsets.append(tuple(offs))
    w_all = jnp.concatenate(blocks, axis=0)                  # (total, maxw)

    b_all = jnp.zeros((_round_up(num_layers, 8), maxw), jnp.float32)
    for i in range(num_layers):
        b_all = b_all.at[i, :3 * douts[i]].set(bcomps[i])

    meta = tuple((douts[i], w_offsets[i], i) for i in range(num_layers))
    return w_all, b_all, meta


def _batch_split(batch):
    """(grid steps, batch-block). One step per TensorCore: v7x has two TCs,
    v5e/v6e have one (a multi-step grid there is pure overhead)."""
    n_tc = 1
    try:
        kind = (jax.devices()[0].device_kind or "").lower()
        if "v7" in kind:
            n_tc = 2
    except Exception:
        pass
    if n_tc > 1 and batch % n_tc == 0:
        return n_tc, batch // n_tc
    return 1, batch


def pyramid_graphsage_forward(layer_params, nodes, adj):
    """PyramidGraphSage.forward — one fused pallas_call over the whole pyramid."""
    batch, n, f0 = nodes.shape
    dout_last = layer_params[-1][6].shape[1]

    w_all, b_all, meta = _pack_params(layer_params, f0)
    n_steps, bblk = _batch_split(batch)

    # VMEM guard (only matters if N is scaled up).
    # TODO(synk): for N in the thousands, tile the aggregation over column
    # blocks of adj (extra "arbitrary" grid axis) before hitting v7x's 64 MiB.
    tile_bytes = 4 * bblk * n * (f0 + n + dout_last)
    const_bytes = 4 * (w_all.size + b_all.size)
    vmem_limit = int(min(32 * 1024 * 1024,
                         max(8 * 1024 * 1024, 8 * (tile_bytes + const_bytes))))

    return pl.pallas_call(
        functools.partial(_pyramid_kernel, meta),
        out_shape=jax.ShapeDtypeStruct((batch, n, dout_last), jnp.float32),
        grid=(n_steps,),
        in_specs=[
            pl.BlockSpec((bblk, n, f0), lambda g: (g, 0, 0)),
            pl.BlockSpec((bblk, n, n), lambda g: (g, 0, 0)),
            pl.BlockSpec(w_all.shape, lambda g: (0, 0)),
            pl.BlockSpec(b_all.shape, lambda g: (0, 0)),
        ],
        out_specs=pl.BlockSpec((bblk, n, dout_last), lambda g: (g, 0, 0)),
        compiler_params=pltpu.CompilerParams(
            dimension_semantics=("parallel",),
            vmem_limit_bytes=vmem_limit),
    )(nodes, adj, w_all, b_all)


# -----------------------------------------------------------------------------
# Parameter construction (deterministic, mimics nn.Linear uniform(+-1/sqrt(in)))
# Weights stored as (fan_in, fan_out) = transpose of torch nn.Linear.weight.
# -----------------------------------------------------------------------------
def _init_linear(key, fan_in, fan_out):
    kw, kb = jax.random.split(key)
    bound = 1.0 / jnp.sqrt(jnp.float32(fan_in))
    w = jax.random.uniform(kw, (fan_in, fan_out), jnp.float32, -bound, bound)
    b = jax.random.uniform(kb, (fan_out,), jnp.float32, -bound, bound)
    return w, b


def init_graphsage_layer(key, input_dim, output_dim, representation_size):
    k1, k2, k3, k4 = jax.random.split(key, 4)
    wsrc, bsrc = _init_linear(k1, input_dim, representation_size)
    wdst, bdst = _init_linear(k2, input_dim, representation_size)
    wself, bself = _init_linear(k3, input_dim, representation_size)
    wu, bu = _init_linear(k4, 3 * representation_size, output_dim)
    return (wsrc, bsrc, wdst, bdst, wself, bself, wu, bu)


def init_pyramid_graphsage(key, num_layers, feature_sizes, representation_sizes=None):
    assert num_layers % 2 == 0
    assert num_layers == len(feature_sizes) - 1
    if representation_sizes is None:
        representation_sizes = feature_sizes[:-1]
    keys = jax.random.split(key, num_layers)
    layers = []
    for i in range(num_layers):
        if i < num_layers // 2:
            in_dim = feature_sizes[i]
        elif i == num_layers // 2:
            in_dim = feature_sizes[i] + feature_sizes[num_layers - i - 1]
        else:
            in_dim = (feature_sizes[i] + feature_sizes[num_layers - i]
                      + feature_sizes[num_layers - i - 1])
        layers.append(init_graphsage_layer(
            keys[i], in_dim, feature_sizes[i + 1], representation_sizes[i]))
    return layers


# -----------------------------------------------------------------------------
# Pure-JAX reference (mirrors the PyTorch module exactly) for a self-check.
# -----------------------------------------------------------------------------
def _reference_forward(layer_params, nodes, adj):
    eps = 1e-12

    def layer(x, a, params):
        wsrc, bsrc, wdst, bdst, wself, bself, wu, bu = params
        src = x @ wsrc + bsrc
        conn = a / jnp.maximum(jnp.sqrt(jnp.sum(a * a, axis=2, keepdims=True)), eps)
        src = jnp.einsum('bjv,bij->biv', src, conn)
        dst = x @ wdst + bdst
        conn = a / jnp.maximum(jnp.sqrt(jnp.sum(a * a, axis=1, keepdims=True)), eps)
        dst = jnp.einsum('bjv,bji->biv', dst, conn)
        self_rep = x @ wself + bself
        upd = jnp.concatenate([src, self_rep, dst], axis=2) @ wu + bu
        return jax.nn.relu(upd)

    L = len(layer_params)
    fpass, stash = nodes, []
    for i in range(L):
        if i < L // 2:
            stash.append(fpass)
        elif i == L // 2:
            fpass = jnp.concatenate((fpass, stash[L - i - 1]), axis=2)
        else:
            fpass = jnp.concatenate((fpass, stash[L - i], stash[L - i - 1]), axis=2)
        fpass = layer(fpass, adj, layer_params[i])
    return fpass


# -----------------------------------------------------------------------------
if __name__ == "__main__":
    key = jax.random.PRNGKey(0)
    k_params, k_nodes, k_adj = jax.random.split(key, 3)

    # small config: 4 layers, feature pyramid [8, 16, 16, 16, 8]
    num_layers = 4
    feature_sizes = [8, 16, 16, 16, 8]
    B, N = 2, 16

    layer_params = init_pyramid_graphsage(k_params, num_layers, feature_sizes)
    nodes = jax.random.normal(k_nodes, (B, N, feature_sizes[0]), jnp.float32)
    adj = (jax.random.uniform(k_adj, (B, N, N), jnp.float32) > 0.5).astype(jnp.float32)

    fwd = jax.jit(pyramid_graphsage_forward)
    out = jax.block_until_ready(fwd(layer_params, nodes, adj))
    assert out.shape == (B, N, feature_sizes[-1]), out.shape

    ref = jax.block_until_ready(_reference_forward(layer_params, nodes, adj))
    max_err = float(jnp.max(jnp.abs(out - ref)))
    # Weight composition changes summation order slightly; keep a tolerance check.
    assert jnp.allclose(out, ref, rtol=1e-3, atol=1e-3), max_err

    print("KERNEL_OK")
</pallas_src>

<mosaic_0001>
module attributes {stable_mosaic.version = 11 : i64} {
  func.func @_pyramid_kernel(%arg0: i32, %arg1: memref<2x16x8xf32, #tpu.memory_space<vmem>>, %arg2: memref<2x16x16xf32, #tpu.memory_space<vmem>>, %arg3: memref<96x48xf32, #tpu.memory_space<vmem>>, %arg4: memref<8x48xf32, #tpu.memory_space<vmem>>, %arg5: memref<2x16x8xf32, #tpu.memory_space<vmem>>) attributes {dimension_semantics = [#tpu.dimension_semantics<parallel>], iteration_bounds = array<i64: 1>, scalar_prefetch = 0 : i64, scratch_operands = 0 : i64, tpu.core_type = #tpu.core_type<tc>, window_params = [{transform_indices = @transform_0, window_bounds = array<i64: 2, 16, 8>}, {transform_indices = @transform_1, window_bounds = array<i64: 2, 16, 16>}, {pipeline_mode = #tpu.pipeline_mode<synchronous>, transform_indices = @transform_2, window_bounds = array<i64: 96, 48>}, {pipeline_mode = #tpu.pipeline_mode<synchronous>, transform_indices = @transform_3, window_bounds = array<i64: 8, 48>}, {transform_indices = @transform_4, window_bounds = array<i64: 2, 16, 8>}]} {
    %c0 = arith.constant 0 : index
    %c0_0 = arith.constant 0 : index
    %c0_1 = arith.constant 0 : index
    %0 = vector.load %arg2[%c0, %c0_0, %c0_1] : memref<2x16x16xf32, #tpu.memory_space<vmem>>, vector<2x16x16xf32>
    %1 = vector.extract_strided_slice %0 {offsets = [0, 0, 0], sizes = [1, 16, 16], strides = [1, 1, 1]} : vector<2x16x16xf32> to vector<1x16x16xf32>
    %2 = vector.shape_cast %1 : vector<1x16x16xf32> to vector<16x16xf32>
    %3 = arith.mulf %2, %2 : vector<16x16xf32>
    %cst = arith.constant dense<0.000000e+00> : vector<16xf32>
    %4 = vector.multi_reduction <add>, %3, %cst [1] : vector<16x16xf32> to vector<16xf32>
    %5 = vector.shape_cast %4 : vector<16xf32> to vector<16x1xf32>
    %cst_2 = arith.constant 1.000000e-24 : f32
    %6 = vector.broadcast %cst_2 : f32 to vector<16x1xf32>
    %7 = arith.maximumf %5, %6 : vector<16x1xf32>
    %8 = math.rsqrt %7 : vector<16x1xf32>
    %9 = arith.mulf %2, %2 : vector<16x16xf32>
    %cst_3 = arith.constant dense<0.000000e+00> : vector<16xf32>
    %10 = vector.multi_reduction <add>, %9, %cst_3 [0] : vector<16x16xf32> to vector<16xf32>
    %11 = vector.shape_cast %10 : vector<16xf32> to vector<1x16xf32>
    %cst_4 = arith.constant 1.000000e-24 : f32
    %12 = vector.broadcast %cst_4 : f32 to vector<1x16xf32>
    %13 = arith.maximumf %11, %12 : vector<1x16xf32>
    %14 = math.rsqrt %13 : vector<1x16xf32>
    %15 = vector.broadcast %8 : vector<16x1xf32> to vector<16x16xf32>
    %16 = arith.mulf %2, %15 : vector<16x16xf32>
    %17 = vector.broadcast %14 : vector<1x16xf32> to vector<16x16xf32>
    %18 = arith.mulf %2, %17 : vector<16x16xf32>
    %19 = tpu.transpose %18, [1, 0] : vector<16x16xf32> -> vector<16x16xf32>
    %20 = tpu.concatenate %16, %19 in 0 : vector<16x16xf32>, vector<16x16xf32> -> vector<32x16xf32>
    %21 = vector.extract_strided_slice %0 {offsets = [1, 0, 0], sizes = [1, 16, 16], strides = [1, 1, 1]} : vector<2x16x16xf32> to vector<1x16x16xf32>
    %22 = vector.shape_cast %21 : vector<1x16x16xf32> to vector<16x16xf32>
    %23 = arith.mulf %22, %22 : vector<16x16xf32>
    %cst_5 = arith.constant dense<0.000000e+00> : vector<16xf32>
    %24 = vector.multi_reduction <add>, %23, %cst_5 [1] : vector<16x16xf32> to vector<16xf32>
    %25 = vector.shape_cast %24 : vector<16xf32> to vector<16x1xf32>
    %cst_6 = arith.constant 1.000000e-24 : f32
    %26 = vector.broadcast %cst_6 : f32 to vector<16x1xf32>
    %27 = arith.maximumf %25, %26 : vector<16x1xf32>
    %28 = math.rsqrt %27 : vector<16x1xf32>
    %29 = arith.mulf %22, %22 : vector<16x16xf32>
    %cst_7 = arith.constant dense<0.000000e+00> : vector<16xf32>
    %30 = vector.multi_reduction <add>, %29, %cst_7 [0] : vector<16x16xf32> to vector<16xf32>
    %31 = vector.shape_cast %30 : vector<16xf32> to vector<1x16xf32>
    %cst_8 = arith.constant 1.000000e-24 : f32
    %32 = vector.broadcast %cst_8 : f32 to vector<1x16xf32>
    %33 = arith.maximumf %31, %32 : vector<1x16xf32>
    %34 = math.rsqrt %33 : vector<1x16xf32>
    %35 = vector.broadcast %28 : vector<16x1xf32> to vector<16x16xf32>
    %36 = arith.mulf %22, %35 : vector<16x16xf32>
    %37 = vector.broadcast %34 : vector<1x16xf32> to vector<16x16xf32>
    %38 = arith.mulf %22, %37 : vector<16x16xf32>
    %39 = tpu.transpose %38, [1, 0] : vector<16x16xf32> -> vector<16x16xf32>
    %40 = tpu.concatenate %36, %39 in 0 : vector<16x16xf32>, vector<16x16xf32> -> vector<32x16xf32>
    %c0_9 = arith.constant 0 : index
    %c0_10 = arith.constant 0 : index
    %c0_11 = arith.constant 0 : index
    %41 = vector.load %arg1[%c0_9, %c0_10, %c0_11] : memref<2x16x8xf32, #tpu.memory_space<vmem>>, vector<2x16x8xf32>
    %42 = vector.shape_cast %41 : vector<2x16x8xf32> to vector<32x8xf32>
    %c0_12 = arith.constant 0 : index
    %c0_13 = arith.constant 0 : index
    %43 = vector.load %arg3[%c0_12, %c0_13] : memref<96x48xf32, #tpu.memory_space<vmem>>, vector<8x48xf32>
    %cst_14 = arith.constant dense<0.000000e+00> : vector<32x48xf32>
    %44 = tpu.matmul %42, %43, %cst_14 {dimension_numbers = #tpu.dot_dimension_numbers<[1], [0], [0], [1], [0, 0, 1, 1], [], []>} : vector<32x8xf32>, vector<8x48xf32>, vector<32x48xf32> -> vector<32x48xf32>
    %c0_15 = arith.constant 0 : index
    %c0_16 = arith.constant 0 : index
    %45 = vector.load %arg4[%c0_15, %c0_16] : memref<8x48xf32, #tpu.memory_space<vmem>>, vector<1x48xf32>
    %46 = vector.broadcast %45 : vector<1x48xf32> to vector<32x48xf32>
    %47 = arith.addf %44, %46 : vector<32x48xf32>
    %48 = vector.extract_strided_slice %47 {offsets = [0, 0], sizes = [16, 48], strides = [1, 1]} : vector<32x48xf32> to vector<16x48xf32>
    %cst_17 = arith.constant dense<0.000000e+00> : vector<32x48xf32>
    %49 = tpu.matmul %20, %48, %cst_17 {dimension_numbers = #tpu.dot_dimension_numbers<[1], [0], [0], [1], [0, 0, 1, 1], [], []>} : vector<32x16xf32>, vector<16x48xf32>, vector<32x48xf32> -> vector<32x48xf32>
    %50 = vector.extract_strided_slice %49 {offsets = [0, 0], sizes = [16, 16], strides = [1, 1]} : vector<32x48xf32> to vector<16x16xf32>
    %51 = vector.extract_strided_slice %48 {offsets = [0, 16], sizes = [16, 16], strides = [1, 1]} : vector<16x48xf32> to vector<16x16xf32>
    %52 = arith.addf %50, %51 : vector<16x16xf32>
    %53 = vector.extract_strided_slice %49 {offsets = [16, 32], sizes = [16, 16], strides = [1, 1]} : vector<32x48xf32> to vector<16x16xf32>
    %54 = arith.addf %52, %53 : vector<16x16xf32>
    %55 = vector.extract_strided_slice %47 {offsets = [16, 0], sizes = [16, 48], strides = [1, 1]} : vector<32x48xf32> to vector<16x48xf32>
    %cst_18 = arith.constant dense<0.000000e+00> : vector<32x48xf32>
    %56 = tpu.matmul %40, %55, %cst_18 {dimension_numbers = #tpu.dot_dimension_numbers<[1], [0], [0], [1], [0, 0, 1, 1], [], []>} : vector<32x16xf32>, vector<16x48xf32>, vector<32x48xf32> -> vector<32x48xf32>
    %57 = vector.extract_strided_slice %56 {offsets = [0, 0], sizes = [16, 16], strides = [1, 1]} : vector<32x48xf32> to vector<16x16xf32>
    %58 = vector.extract_strided_slice %55 {offsets = [0, 16], sizes = [16, 16], strides = [1, 1]} : vector<16x48xf32> to vector<16x16xf32>
    %59 = arith.addf %57, %58 : vector<16x16xf32>
    %60 = vector.extract_strided_slice %56 {offsets = [16, 32], sizes = [16, 16], strides = [1, 1]} : vector<32x48xf32> to vector<16x16xf32>
    %61 = arith.addf %59, %60 : vector<16x16xf32>
    %62 = tpu.concatenate %54, %61 in 0 : vector<16x16xf32>, vector<16x16xf32> -> vector<32x16xf32>
    %cst_19 = arith.constant 0.000000e+00 : f32
    %63 = vector.broadcast %cst_19 : f32 to vector<32x16xf32>
    %64 = arith.maximumf %62, %63 : vector<32x16xf32>
    %c8 = arith.constant 8 : index
    %c0_20 = arith.constant 0 : index
    %65 = vector.load %arg3[%c8, %c0_20] : memref<96x48xf32, #tpu.memory_space<vmem>>, vector<16x48xf32>
    %cst_21 = arith.constant dense<0.000000e+00> : vector<32x48xf32>
    %66 = tpu.matmul %64, %65, %cst_21 {dimension_numbers = #tpu.dot_dimension_numbers<[1], [0], [0], [1], [0, 0, 1, 1], [], []>} : vector<32x16xf32>, vector<16x48xf32>, vector<32x48xf32> -> vector<32x48xf32>
    %c1 = arith.constant 1 : index
    %c0_22 = arith.constant 0 : index
    %67 = vector.load %arg4[%c1, %c0_22] : memref<8x48xf32, #tpu.memory_space<vmem>>, vector<1x48xf32>
    %68 = vector.broadcast %67 : vector<1x48xf32> to vector<32x48xf32>
    %69 = arith.addf %66, %68 : vector<32x48xf32>
    %70 = vector.extract_strided_slice %69 {offsets = [0, 0], sizes = [16, 48], strides = [1, 1]} : vector<32x48xf32> to vector<16x48xf32>
    %cst_23 = arith.constant dense<0.000000e+00> : vector<32x48xf32>
    %71 = tpu.matmul %20, %70, %cst_23 {dimension_numbers = #tpu.dot_dimension_numbers<[1], [0], [0], [1], [0, 0, 1, 1], [], []>} : vector<32x16xf32>, vector<16x48xf32>, vector<32x48xf32> -> vector<32x48xf32>
    %72 = vector.extract_strided_slice %71 {offsets = [0, 0], sizes = [16, 16], strides = [1, 1]} : vector<32x48xf32> to vector<16x16xf32>
    %73 = vector.extract_strided_slice %70 {offsets = [0, 16], sizes = [16, 16], strides = [1, 1]} : vector<16x48xf32> to vector<16x16xf32>
    %74 = arith.addf %72, %73 : vector<16x16xf32>
    %75 = vector.extract_strided_slice %71 {offsets = [16, 32], sizes = [16, 16], strides = [1, 1]} : vector<32x48xf32> to vector<16x16xf32>
    %76 = arith.addf %74, %75 : vector<16x16xf32>
    %77 = vector.extract_strided_slice %69 {offsets = [16, 0], sizes = [16, 48], strides = [1, 1]} : vector<32x48xf32> to vector<16x48xf32>
    %cst_24 = arith.constant dense<0.000000e+00> : vector<32x48xf32>
    %78 = tpu.matmul %40, %77, %cst_24 {dimension_numbers = #tpu.dot_dimension_numbers<[1], [0], [0], [1], [0, 0, 1, 1], [], []>} : vector<32x16xf32>, vector<16x48xf32>, vector<32x48xf32> -> vector<32x48xf32>
    %79 = vector.extract_strided_slice %78 {offsets = [0, 0], sizes = [16, 16], strides = [1, 1]} : vector<32x48xf32> to vector<16x16xf32>
    %80 = vector.extract_strided_slice %77 {offsets = [0, 16], sizes = [16, 16], strides = [1, 1]} : vector<16x48xf32> to vector<16x16xf32>
    %81 = arith.addf %79, %80 : vector<16x16xf32>
    %82 = vector.extract_strided_slice %78 {offsets = [16, 32], sizes = [16, 16], strides = [1, 1]} : vector<32x48xf32> to vector<16x16xf32>
    %83 = arith.addf %81, %82 : vector<16x16xf32>
    %84 = tpu.concatenate %76, %83 in 0 : vector<16x16xf32>, vector<16x16xf32> -> vector<32x16xf32>
    %cst_25 = arith.constant 0.000000e+00 : f32
    %85 = vector.broadcast %cst_25 : f32 to vector<32x16xf32>
    %86 = arith.maximumf %84, %85 : vector<32x16xf32>
    %c24 = arith.constant 24 : index
    %c0_26 = arith.constant 0 : index
    %87 = vector.load %arg3[%c24, %c0_26] : memref<96x48xf32, #tpu.memory_space<vmem>>, vector<16x48xf32>
    %cst_27 = arith.constant dense<0.000000e+00> : vector<32x48xf32>
    %88 = tpu.matmul %86, %87, %cst_27 {dimension_numbers = #tpu.dot_dimension_numbers<[1], [0], [0], [1], [0, 0, 1, 1], [], []>} : vector<32x16xf32>, vector<16x48xf32>, vector<32x48xf32> -> vector<32x48xf32>
    %c40 = arith.constant 40 : index
    %c0_28 = arith.constant 0 : index
    %89 = vector.load %arg3[%c40, %c0_28] : memref<96x48xf32, #tpu.memory_space<vmem>>, vector<16x48xf32>
    %cst_29 = arith.constant dense<0.000000e+00> : vector<32x48xf32>
    %90 = tpu.matmul %64, %89, %cst_29 {dimension_numbers = #tpu.dot_dimension_numbers<[1], [0], [0], [1], [0, 0, 1, 1], [], []>} : vector<32x16xf32>, vector<16x48xf32>, vector<32x48xf32> -> vector<32x48xf32>
    %91 = arith.addf %88, %90 : vector<32x48xf32>
    %c2 = arith.constant 2 : index
    %c0_30 = arith.constant 0 : index
    %92 = vector.load %arg4[%c2, %c0_30] : memref<8x48xf32, #tpu.memory_space<vmem>>, vector<1x48xf32>
    %93 = vector.broadcast %92 : vector<1x48xf32> to vector<32x48xf32>
    %94 = arith.addf %91, %93 : vector<32x48xf32>
    %95 = vector.extract_strided_slice %94 {offsets = [0, 0], sizes = [16, 48], strides = [1, 1]} : vector<32x48xf32> to vector<16x48xf32>
    %cst_31 = arith.constant dense<0.000000e+00> : vector<32x48xf32>
    %96 = tpu.matmul %20, %95, %cst_31 {dimension_numbers = #tpu.dot_dimension_numbers<[1], [0], [0], [1], [0, 0, 1, 1], [], []>} : vector<32x16xf32>, vector<16x48xf32>, vector<32x48xf32> -> vector<32x48xf32>
    %97 = vector.extract_strided_slice %96 {offsets = [0, 0], sizes = [16, 16], strides = [1, 1]} : vector<32x48xf32> to vector<16x16xf32>
    %98 = vector.extract_strided_slice %95 {offsets = [0, 16], sizes = [16, 16], strides = [1, 1]} : vector<16x48xf32> to vector<16x16xf32>
    %99 = arith.addf %97, %98 : vector<16x16xf32>
    %100 = vector.extract_strided_slice %96 {offsets = [16, 32], sizes = [16, 16], strides = [1, 1]} : vector<32x48xf32> to vector<16x16xf32>
    %101 = arith.addf %99, %100 : vector<16x16xf32>
    %102 = vector.extract_strided_slice %94 {offsets = [16, 0], sizes = [16, 48], strides = [1, 1]} : vector<32x48xf32> to vector<16x48xf32>
    %cst_32 = arith.constant dense<0.000000e+00> : vector<32x48xf32>
    %103 = tpu.matmul %40, %102, %cst_32 {dimension_numbers = #tpu.dot_dimension_numbers<[1], [0], [0], [1], [0, 0, 1, 1], [], []>} : vector<32x16xf32>, vector<16x48xf32>, vector<32x48xf32> -> vector<32x48xf32>
    %104 = vector.extract_strided_slice %103 {offsets = [0, 0], sizes = [16, 16], strides = [1, 1]} : vector<32x48xf32> to vector<16x16xf32>
    %105 = vector.extract_strided_slice %102 {offsets = [0, 16], sizes = [16, 16], strides = [1, 1]} : vector<16x48xf32> to vector<16x16xf32>
    %106 = arith.addf %104, %105 : vector<16x16xf32>
    %107 = vector.extract_strided_slice %103 {offsets = [16, 32], sizes = [16, 16], strides = [1, 1]} : vector<32x48xf32> to vector<16x16xf32>
    %108 = arith.addf %106, %107 : vector<16x16xf32>
    %109 = tpu.concatenate %101, %108 in 0 : vector<16x16xf32>, vector<16x16xf32> -> vector<32x16xf32>
    %cst_33 = arith.constant 0.000000e+00 : f32
    %110 = vector.broadcast %cst_33 : f32 to vector<32x16xf32>
    %111 = arith.maximumf %109, %110 : vector<32x16xf32>
    %c56 = arith.constant 56 : index
    %c0_34 = arith.constant 0 : index
    %112 = vector.load %arg3[%c56, %c0_34] : memref<96x48xf32, #tpu.memory_space<vmem>>, vector<16x24xf32>
    %cst_35 = arith.constant dense<0.000000e+00> : vector<32x24xf32>
    %113 = tpu.matmul %111, %112, %cst_35 {dimension_numbers = #tpu.dot_dimension_numbers<[1], [0], [0], [1], [0, 0, 1, 1], [], []>} : vector<32x16xf32>, vector<16x24xf32>, vector<32x24xf32> -> vector<32x24xf32>
    %c72 = arith.constant 72 : index
    %c0_36 = arith.constant 0 : index
    %114 = vector.load %arg3[%c72, %c0_36] : memref<96x48xf32, #tpu.memory_space<vmem>>, vector<16x24xf32>
    %cst_37 = arith.constant dense<0.000000e+00> : vector<32x24xf32>
    %115 = tpu.matmul %64, %114, %cst_37 {dimension_numbers = #tpu.dot_dimension_numbers<[1], [0], [0], [1], [0, 0, 1, 1], [], []>} : vector<32x16xf32>, vector<16x24xf32>, vector<32x24xf32> -> vector<32x24xf32>
    %116 = arith.addf %113, %115 : vector<32x24xf32>
    %c88 = arith.constant 88 : index
    %c0_38 = arith.constant 0 : index
    %117 = vector.load %arg3[%c88, %c0_38] : memref<96x48xf32, #tpu.memory_space<vmem>>, vector<8x24xf32>
    %cst_39 = arith.constant dense<0.000000e+00> : vector<32x24xf32>
    %118 = tpu.matmul %42, %117, %cst_39 {dimension_numbers = #tpu.dot_dimension_numbers<[1], [0], [0], [1], [0, 0, 1, 1], [], []>} : vector<32x8xf32>, vector<8x24xf32>, vector<32x24xf32> -> vector<32x24xf32>
    %119 = arith.addf %116, %118 : vector<32x24xf32>
    %c3 = arith.constant 3 : index
    %c0_40 = arith.constant 0 : index
    %120 = vector.load %arg4[%c3, %c0_40] : memref<8x48xf32, #tpu.memory_space<vmem>>, vector<1x24xf32>
    %121 = vector.broadcast %120 : vector<1x24xf32> to vector<32x24xf32>
    %122 = arith.addf %119, %121 : vector<32x24xf32>
    %123 = vector.extract_strided_slice %122 {offsets = [0, 0], sizes = [16, 24], strides = [1, 1]} : vector<32x24xf32> to vector<16x24xf32>
    %cst_41 = arith.constant dense<0.000000e+00> : vector<32x24xf32>
    %124 = tpu.matmul %20, %123, %cst_41 {dimension_numbers = #tpu.dot_dimension_numbers<[1], [0], [0], [1], [0, 0, 1, 1], [], []>} : vector<32x16xf32>, vector<16x24xf32>, vector<32x24xf32> -> vector<32x24xf32>
    %125 = vector.extract_strided_slice %124 {offsets = [0, 0], sizes = [16, 8], strides = [1, 1]} : vector<32x24xf32> to vector<16x8xf32>
    %126 = vector.extract_strided_slice %123 {offsets = [0, 8], sizes = [16, 8], strides = [1, 1]} : vector<16x24xf32> to vector<16x8xf32>
    %127 = arith.addf %125, %126 : vector<16x8xf32>
    %128 = vector.extract_strided_slice %124 {offsets = [16, 16], sizes = [16, 8], strides = [1, 1]} : vector<32x24xf32> to vector<16x8xf32>
    %129 = arith.addf %127, %128 : vector<16x8xf32>
    %130 = vector.extract_strided_slice %122 {offsets = [16, 0], sizes = [16, 24], strides = [1, 1]} : vector<32x24xf32> to vector<16x24xf32>
    %cst_42 = arith.constant dense<0.000000e+00> : vector<32x24xf32>
    %131 = tpu.matmul %40, %130, %cst_42 {dimension_numbers = #tpu.dot_dimension_numbers<[1], [0], [0], [1], [0, 0, 1, 1], [], []>} : vector<32x16xf32>, vector<16x24xf32>, vector<32x24xf32> -> vector<32x24xf32>
    %132 = vector.extract_strided_slice %131 {offsets = [0, 0], sizes = [16, 8], strides = [1, 1]} : vector<32x24xf32> to vector<16x8xf32>
    %133 = vector.extract_strided_slice %130 {offsets = [0, 8], sizes = [16, 8], strides = [1, 1]} : vector<16x24xf32> to vector<16x8xf32>
    %134 = arith.addf %132, %133 : vector<16x8xf32>
    %135 = vector.extract_strided_slice %131 {offsets = [16, 16], sizes = [16, 8], strides = [1, 1]} : vector<32x24xf32> to vector<16x8xf32>
    %136 = arith.addf %134, %135 : vector<16x8xf32>
    %137 = tpu.concatenate %129, %136 in 0 : vector<16x8xf32>, vector<16x8xf32> -> vector<32x8xf32>
    %cst_43 = arith.constant 0.000000e+00 : f32
    %138 = vector.broadcast %cst_43 : f32 to vector<32x8xf32>
    %139 = arith.maximumf %137, %138 : vector<32x8xf32>
    %140 = vector.shape_cast %139 : vector<32x8xf32> to vector<2x16x8xf32>
    %c0_44 = arith.constant 0 : index
    %c0_45 = arith.constant 0 : index
    %c0_46 = arith.constant 0 : index
    %141 = vector.load %arg5[%c0_44, %c0_45, %c0_46] : memref<2x16x8xf32, #tpu.memory_space<vmem>>, vector<2x16x8xf32>
    tpu.vector_store %arg5[%c0_44, %c0_45, %c0_46], %140 {strides = array<i32>} : memref<2x16x8xf32, #tpu.memory_space<vmem>>, vector<2x16x8xf32>,
    return
  }
  func.func @transform_0(%arg0: i32) -> (i32, i32, i32) {
    %c0_i32 = arith.constant 0 : i32
    %c0_i32_0 = arith.constant 0 : i32
    %c0_i32_1 = arith.constant 0 : i32
    return %arg0, %c0_i32, %c0_i32_0 : i32, i32, i32
  }
  func.func @transform_1(%arg0: i32) -> (i32, i32, i32) {
    %c0_i32 = arith.constant 0 : i32
    %c0_i32_0 = arith.constant 0 : i32
    %c0_i32_1 = arith.constant 0 : i32
    return %arg0, %c0_i32, %c0_i32_0 : i32, i32, i32
  }
  func.func @transform_2(%arg0: i32) -> (i32, i32) {
    %c0_i32 = arith.constant 0 : i32
    %c0_i32_0 = arith.constant 0 : i32
    %c0_i32_1 = arith.constant 0 : i32
    return %c0_i32, %c0_i32_0 : i32, i32
  }
  func.func @transform_3(%arg0: i32) -> (i32, i32) {
    %c0_i32 = arith.constant 0 : i32
    %c0_i32_0 = arith.constant 0 : i32
    %c0_i32_1 = arith.constant 0 : i32
    return %c0_i32, %c0_i32_0 : i32, i32
  }
  func.func @transform_4(%arg0: i32) -> (i32, i32, i32) {
    %c0_i32 = arith.constant 0 : i32
    %c0_i32_0 = arith.constant 0 : i32
    %c0_i32_1 = arith.constant 0 : i32
    return %arg0, %c0_i32, %c0_i32_0 : i32, i32, i32
  }
}

</mosaic_0001>

<llo_original>
// kernel: pyramid_graphsage_forward.1
$region0: #{pyramid_graphsage_forward.1}
  #allocation0 [shape = 'u32[]', space=smem, size = 0x4, offset = 0x4, fixed_abs, tag = 'smem constant byte address 0x4 - core index']
  #allocation1 [shape = 'u32[144,128]{1,0:T(1,128)}', space=vmem, size = 0x12000, scoped, tag = 'internal scratch']
  %s0 = inlined_call_operand.vmem [shape: f32[2,16,8], index: 0, kind: input, shape index: {}]
  %s1 = inlined_call_operand.vmem [shape: f32[2,16,16], index: 1, kind: input, shape index: {}]
  %s2 = inlined_call_operand.vmem [shape: f32[96,48], index: 2, kind: input, shape index: {}]
  %s3 = inlined_call_operand.vmem [shape: f32[8,48], index: 3, kind: input, shape index: {}]
  %s4 = inlined_call_operand.vmem [shape: f32[2,16,8], index: 4, kind: output, shape index: {}]
  %s5 = sld [smem:[#allocation0]]
  $region26: #{pyramid_graphsage_forward.1} parent=0
    _
  %s7 = ssub.s32 1, %s5
  %s8 = scalar_select 0, %s7, %s5
  // Predicated region
  $region2: #{pyramid_graphsage_forward.1} parent=0 // pred_check
    _
  $region3: #{pyramid_graphsage_forward.1} parent=0 // pred_check_branch
    %10 = sbr.rel (0) target = $region5
  $region4: #{pyramid_graphsage_forward.1} parent=0 // pred_region
    _
  $region5: #{pyramid_graphsage_forward.1} parent=0 // pred_fallthru
    _
  // Predicated region
  $region6: #{pyramid_graphsage_forward.1} parent=0 // pred_check
    _
  $region7: #{pyramid_graphsage_forward.1} parent=0 // pred_check_branch
    %12 = sbr.rel (0) target = $region9
  $region8: #{pyramid_graphsage_forward.1} parent=0 // pred_region
    _
  $region9: #{pyramid_graphsage_forward.1} parent=0 // pred_fallthru
    _
  // Predicated region
  $region10: #{pyramid_graphsage_forward.1} parent=0 // pred_check
    _
  $region11: #{pyramid_graphsage_forward.1} parent=0 // pred_check_branch
    %14 = sbr.rel (0) target = $region13
  $region12: #{pyramid_graphsage_forward.1} parent=0 // pred_region
    _
  $region13: #{pyramid_graphsage_forward.1} parent=0 // pred_fallthru
    _
  // Predicated region
  $region14: #{pyramid_graphsage_forward.1} parent=0 // pred_check
    _
  $region15: #{pyramid_graphsage_forward.1} parent=0 // pred_check_branch
    %16 = sbr.rel (0) target = $region17
  $region16: #{pyramid_graphsage_forward.1} parent=0 // pred_region
    _
  $region17: #{pyramid_graphsage_forward.1} parent=0 // pred_fallthru
    _
  %v17 = vld [vmem:[%s1] sm:$0xff]
  %v18 = vld [vmem:[%s1 + $0x8] sm:$0xff]
  %v19 = vld [vmem:[%s1 + $0x10] sm:$0xff]
  %v20 = vld [vmem:[%s1 + $0x18] sm:$0xff]
  %v21 = vmul.f32 %v17, %v17
  %v22 = vmul.f32 %v18, %v18
  %vm23 = vcmask 130048
  %v24 = vsel %vm23, %v21, 0.0
  %25 = vadd.xlane.f32.xlu0 %v24
  %v26 = vpop.xlane.xlu0 %25
  %v27 = vsel %vm23, %v22, 0.0
  %28 = vadd.xlane.f32.xlu0 %v27
  %v29 = vpop.xlane.xlu0 %28
  %v30 = vmax.f32 %v26, 1e-24
  %v31 = vmax.f32 %v29, 1e-24
  %v32 = vrsqrt.pop %v30
  %v33 = vrsqrt.pop %v31
  %v34 = vadd.f32 %v24, %v27
  %v35 = vrot.slane %v34, 4
  %v36 = vadd.f32 %v34, %v35
  %v37 = vrot.slane %v36, 2
  %v38 = vadd.f32 %v36, %v37
  %v39 = vrot.slane %v38, 1
  %v40 = vadd.f32 %v38, %v39
  %v41 = vmax.f32 %v40, 1e-24
  %v42 = vrsqrt.pop %v41
  %v43 = vmul.f32 %v17, %v32
  %v44 = vmul.f32 %v18, %v33
  %v45 = vmul.f32 %v17, %v42
  %v46 = vmul.f32 %v18, %v42
  %47 = vxpose.xlu0.b32.start [1/16] %v45, 128
  %48 = vxpose.xlu0.b32.cont [2/16] %v46, 128
  %49 = vxpose.xlu0.b32.cont [3/16] 0.0, 128
  %50 = vxpose.xlu0.b32.cont [4/16] 0.0, 128
  %51 = vxpose.xlu0.b32.cont [5/16] 0.0, 128
  %52 = vxpose.xlu0.b32.cont [6/16] 0.0, 128
  %53 = vxpose.xlu0.b32.cont [7/16] 0.0, 128
  %54 = vxpose.xlu0.b32.cont [8/16] 0.0, 128
  %55 = vxpose.xlu0.b32.cont [9/16] 0.0, 128
  %56 = vxpose.xlu0.b32.cont [10/16] 0.0, 128
  %57 = vxpose.xlu0.b32.cont [11/16] 0.0, 128
  %58 = vxpose.xlu0.b32.cont [12/16] 0.0, 128
  %59 = vxpose.xlu0.b32.cont [13/16] 0.0, 128
  %60 = vxpose.xlu0.b32.cont [14/16] 0.0, 128
  %61 = vxpose.xlu0.b32.cont [15/16] 0.0, 128
  %62 = vxpose.xlu0.b32.end [16/16] 0.0, 128
  %v63 = vpop.trf.xlu0
  %v64 = vpop.trf.xlu0
  %v65 = vpop.trf.xlu0
  %v66 = vpop.trf.xlu0
  %v67 = vpop.trf.xlu0
  %v68 = vpop.trf.xlu0
  %v69 = vpop.trf.xlu0
  %v70 = vpop.trf.xlu0
  %v71 = vpop.trf.xlu0
  %v72 = vpop.trf.xlu0
  %v73 = vpop.trf.xlu0
  %v74 = vpop.trf.xlu0
  %v75 = vpop.trf.xlu0
  %v76 = vpop.trf.xlu0
  %v77 = vpop.trf.xlu0
  %v78 = vpop.trf.xlu0
  %v79 = vmul.f32 %v19, %v19
  %v80 = vmul.f32 %v20, %v20
  %v81 = vsel %vm23, %v79, 0.0
  %82 = vadd.xlane.f32.xlu0 %v81
  %v83 = vpop.xlane.xlu0 %82
  %v84 = vsel %vm23, %v80, 0.0
  %85 = vadd.xlane.f32.xlu0 %v84
  %v86 = vpop.xlane.xlu0 %85
  %v87 = vmax.f32 %v83, 1e-24
  %v88 = vmax.f32 %v86, 1e-24
  %v89 = vrsqrt.pop %v87
  %v90 = vrsqrt.pop %v88
  %v91 = vadd.f32 %v81, %v84
  %v92 = vrot.slane %v91, 4
  %v93 = vadd.f32 %v91, %v92
  %v94 = vrot.slane %v93, 2
  %v95 = vadd.f32 %v93, %v94
  %v96 = vrot.slane %v95, 1
  %v97 = vadd.f32 %v95, %v96
  %v98 = vmax.f32 %v97, 1e-24
  %v99 = vrsqrt.pop %v98
  %v100 = vmul.f32 %v19, %v89
  %v101 = vmul.f32 %v20, %v90
  %v102 = vmul.f32 %v19, %v99
  %v103 = vmul.f32 %v20, %v99
  %104 = vxpose.xlu0.b32.start [1/16] %v102, 128
  %105 = vxpose.xlu0.b32.cont [2/16] %v103, 128
  %106 = vxpose.xlu0.b32.cont [3/16] 0.0, 128
  %107 = vxpose.xlu0.b32.cont [4/16] 0.0, 128
  %108 = vxpose.xlu0.b32.cont [5/16] 0.0, 128
  %109 = vxpose.xlu0.b32.cont [6/16] 0.0, 128
  %110 = vxpose.xlu0.b32.cont [7/16] 0.0, 128
  %111 = vxpose.xlu0.b32.cont [8/16] 0.0, 128
  %112 = vxpose.xlu0.b32.cont [9/16] 0.0, 128
  %113 = vxpose.xlu0.b32.cont [10/16] 0.0, 128
  %114 = vxpose.xlu0.b32.cont [11/16] 0.0, 128
  %115 = vxpose.xlu0.b32.cont [12/16] 0.0, 128
  %116 = vxpose.xlu0.b32.cont [13/16] 0.0, 128
  %117 = vxpose.xlu0.b32.cont [14/16] 0.0, 128
  %118 = vxpose.xlu0.b32.cont [15/16] 0.0, 128
  %119 = vxpose.xlu0.b32.end [16/16] 0.0, 128
  %v120 = vpop.trf.xlu0
  %v121 = vpop.trf.xlu0
  %v122 = vpop.trf.xlu0
  %v123 = vpop.trf.xlu0
  %v124 = vpop.trf.xlu0
  %v125 = vpop.trf.xlu0
  %v126 = vpop.trf.xlu0
  %v127 = vpop.trf.xlu0
  %v128 = vpop.trf.xlu0
  %v129 = vpop.trf.xlu0
  %v130 = vpop.trf.xlu0
  %v131 = vpop.trf.xlu0
  %v132 = vpop.trf.xlu0
  %v133 = vpop.trf.xlu0
  %v134 = vpop.trf.xlu0
  %v135 = vpop.trf.xlu0
  %v136 = vld [vmem:[%s0] sm:$0xff]
  %v137 = vld [vmem:[%s0 + $0x8] sm:$0xff]
  %v138 = vld [vmem:[%s0 + $0x10] sm:$0xff]
  %v139 = vld [vmem:[%s0 + $0x18] sm:$0xff]
  %v140 = vld [vmem:[%s2] sm:$0xff]
  %v141 = vld [vmem:[%s3] sm:$0x1]
  %v142 = vlaneseq
  %v143 = vshrl.u32 %v142, 7
  %v144 = vsub.s32 0, %v143
  %v145 = vrot.slane %v141, %v144
  %vm146 = vcmask 64512
  %v148 = vsel %vm146, %v136, 0
  %v151 = vsel %vm146, %v137, 0
  %v154 = vsel %vm146, %v138, 0
  %v157 = vsel %vm146, %v139, 0
  %159 = vmatprep.subr.mxu0 0.0
  %160 = vmatpush1.msra.mxu0 %v140
  %161 = vmatprep.subr.mxu0 0.0
  %162 = vmatpush1.msra.mxu0 0.0
  %163 = vmatprep.subr.mxu0 0.0
  %164 = vmatpush1.msra.mxu0 0.0
  %165 = vmatprep.subr.mxu0 0.0
  %166 = vmatpush1.msra.mxu0 0.0
  %167 = vmatprep.subr.mxu0 0.0
  %168 = vmatpush1.msra.mxu0 0.0
  %169 = vmatprep.subr.mxu0 0.0
  %170 = vmatpush1.msra.mxu0 0.0
  %171 = vmatprep.subr.mxu0 0.0
  %172 = vmatpush1.msra.mxu0 0.0
  %173 = vmatprep.subr.mxu0 0.0
  %174 = vmatpush1.msra.mxu0 0.0
  %175 = vmatprep.subr.mxu0 0.0
  %176 = vmatpush1.msra.mxu0 0.0
  %177 = vmatprep.subr.mxu0 0.0
  %178 = vmatpush1.msra.mxu0 0.0
  %179 = vmatprep.subr.mxu0 0.0
  %180 = vmatpush1.msra.mxu0 0.0
  %181 = vmatprep.subr.mxu0 0.0
  %182 = vmatpush1.msra.mxu0 0.0
  %183 = vmatprep.subr.mxu0 0.0
  %184 = vmatpush1.msra.mxu0 0.0
  %185 = vmatprep.subr.mxu0 0.0
  %186 = vmatpush1.msra.mxu0 0.0
  %187 = vmatprep.subr.mxu0 0.0
  %188 = vmatpush1.msra.mxu0 0.0
  %189 = vmatprep.subr.mxu0 0.0
  %190 = vmatpush1.msra.mxu0 0.0
  %191 = vmatprep.subr.mxu0 0.0
  %192 = vmatpush1.msra.mxu0 0.0
  %193 = vmatprep.subr.mxu0 0.0
  %194 = vmatpush1.msra.mxu0 0.0
  %195 = vmatprep.subr.mxu0 0.0
  %196 = vmatpush1.msra.mxu0 0.0
  %197 = vmatprep.subr.mxu0 0.0
  %198 = vmatpush1.msra.mxu0 0.0
  %199 = vmatprep.subr.mxu0 0.0
  %200 = vmatpush1.msra.mxu0 0.0
  %201 = vmatprep.subr.mxu0 0.0
  %202 = vmatpush1.msra.mxu0 0.0
  %203 = vmatprep.subr.mxu0 0.0
  %204 = vmatpush1.msra.mxu0 0.0
  %205 = vmatprep.subr.mxu0 0.0
  %206 = vmatpush1.msra.mxu0 0.0
  %207 = vmatprep.subr.mxu0 0.0
  %208 = vmatpush1.msra.mxu0 0.0
  %209 = vmatprep.subr.mxu0 0.0
  %210 = vmatpush1.msra.mxu0 0.0
  %211 = vmatprep.subr.mxu0 0.0
  %212 = vmatpush1.msra.mxu0 0.0
  %213 = vmatprep.subr.mxu0 0.0
  %214 = vmatpush1.msra.mxu0 0.0
  %215 = vmatprep.subr.mxu0 0.0
  %216 = vmatpush1.msra.mxu0 0.0
  %217 = vmatprep.subr.mxu0 0.0
  %218 = vmatpush1.msra.mxu0 0.0
  %219 = vmatprep.subr.mxu0 0.0
  %220 = vmatpush1.msra.mxu0 0.0
  %221 = vmatprep.subr.mxu0 0.0
  %222 = vmatpush1.msra.mxu0 0.0
  %223 = vmatprep.mubr.f32.mxu0 0.0
  %224 = vmatmul.mubr.f32.gmra.mrb[0].mxu0 %v148
  %v225 = vpop.f32.mrb[0].mxu0
  %v226 = vadd.f32 %v145, %v225
  %v227 = vpop.f32.mrb[0].mxu0
  %228 = vmatprep.mubr.f32.mxu0 0.0
  %229 = vmatmul.mubr.f32.gmra.mrb[0].mxu0 %v151
  %v230 = vpop.f32.mrb[0].mxu0
  %v231 = vadd.f32 %v145, %v230
  %v232 = vpop.f32.mrb[0].mxu0
  %233 = vmatprep.mubr.f32.mxu0 0.0
  %234 = vmatmul.mubr.f32.gmra.mrb[0].mxu0 %v154
  %v235 = vpop.f32.mrb[0].mxu0
  %v236 = vadd.f32 %v145, %v235
  %v237 = vpop.f32.mrb[0].mxu0
  %238 = vmatprep.mubr.f32.mxu0 0.0
  %239 = vmatmul.mubr.f32.gmra.mrb[0].mxu0 %v157
  %v240 = vpop.f32.mrb[0].mxu0
  %v241 = vadd.f32 %v145, %v240
  %v242 = vpop.f32.mrb[0].mxu0
  %243 = vdwg.mxu0
  %v245 = vsel %vm23, %v43, 0
  %v248 = vsel %vm23, %v44, 0
  %v251 = vsel %vm23, %v63, 0
  %v254 = vsel %vm23, %v64, 0
  %256 = vmatprep.subr.mxu0 0.0
  %257 = vmatpush1.msra.mxu0 %v226
  %258 = vmatprep.subr.mxu0 0.0
  %259 = vmatpush1.msra.mxu0 %v231
  %260 = vmatprep.subr.mxu0 0.0
  %261 = vmatpush1.msra.mxu0 0.0
  %262 = vmatprep.subr.mxu0 0.0
  %263 = vmatpush1.msra.mxu0 0.0
  %264 = vmatprep.subr.mxu0 0.0
  %265 = vmatpush1.msra.mxu0 0.0
  %266 = vmatprep.subr.mxu0 0.0
  %267 = vmatpush1.msra.mxu0 0.0
  %268 = vmatprep.subr.mxu0 0.0
  %269 = vmatpush1.msra.mxu0 0.0
  %270 = vmatprep.subr.mxu0 0.0
  %271 = vmatpush1.msra.mxu0 0.0
  %272 = vmatprep.subr.mxu0 0.0
  %273 = vmatpush1.msra.mxu0 0.0
  %274 = vmatprep.subr.mxu0 0.0
  %275 = vmatpush1.msra.mxu0 0.0
  %276 = vmatprep.subr.mxu0 0.0
  %277 = vmatpush1.msra.mxu0 0.0
  %278 = vmatprep.subr.mxu0 0.0
  %279 = vmatpush1.msra.mxu0 0.0
  %280 = vmatprep.subr.mxu0 0.0
  %281 = vmatpush1.msra.mxu0 0.0
  %282 = vmatprep.subr.mxu0 0.0
  %283 = vmatpush1.msra.mxu0 0.0
  %284 = vmatprep.subr.mxu0 0.0
  %285 = vmatpush1.msra.mxu0 0.0
  %286 = vmatprep.subr.mxu0 0.0
  %287 = vmatpush1.msra.mxu0 0.0
  %288 = vmatprep.subr.mxu0 0.0
  %289 = vmatpush1.msra.mxu0 0.0
  %290 = vmatprep.subr.mxu0 0.0
  %291 = vmatpush1.msra.mxu0 0.0
  %292 = vmatprep.subr.mxu0 0.0
  %293 = vmatpush1.msra.mxu0 0.0
  %294 = vmatprep.subr.mxu0 0.0
  %295 = vmatpush1.msra.mxu0 0.0
  %296 = vmatprep.subr.mxu0 0.0
  %297 = vmatpush1.msra.mxu0 0.0
  %298 = vmatprep.subr.mxu0 0.0
  %299 = vmatpush1.msra.mxu0 0.0
  %300 = vmatprep.subr.mxu0 0.0
  %301 = vmatpush1.msra.mxu0 0.0
  %302 = vmatprep.subr.mxu0 0.0
  %303 = vmatpush1.msra.mxu0 0.0
  %304 = vmatprep.subr.mxu0 0.0
  %305 = vmatpush1.msra.mxu0 0.0
  %306 = vmatprep.subr.mxu0 0.0
  %307 = vmatpush1.msra.mxu0 0.0
  %308 = vmatprep.subr.mxu0 0.0
  %309 = vmatpush1.msra.mxu0 0.0
  %310 = vmatprep.subr.mxu0 0.0
  %311 = vmatpush1.msra.mxu0 0.0
  %312 = vmatprep.subr.mxu0 0.0
  %313 = vmatpush1.msra.mxu0 0.0
  %314 = vmatprep.subr.mxu0 0.0
  %315 = vmatpush1.msra.mxu0 0.0
  %316 = vmatprep.subr.mxu0 0.0
  %317 = vmatpush1.msra.mxu0 0.0
  %318 = vmatprep.subr.mxu0 0.0
  %319 = vmatpush1.msra.mxu0 0.0
  %320 = vmatprep.mubr.f32.mxu0 0.0
  %321 = vmatmul.mubr.f32.gmra.mrb[0].mxu0 %v245
  %v322 = vpop.f32.mrb[0].mxu0
  %v323 = vadd.f32 0.0, %v322
  %v324 = vpop.f32.mrb[0].mxu0
  %325 = vmatprep.mubr.f32.mxu0 0.0
  %326 = vmatmul.mubr.f32.gmra.mrb[0].mxu0 %v248
  %v327 = vpop.f32.mrb[0].mxu0
  %v328 = vadd.f32 0.0, %v327
  %v329 = vpop.f32.mrb[0].mxu0
  %330 = vmatprep.mubr.f32.mxu0 0.0
  %331 = vmatmul.mubr.f32.gmra.mrb[0].mxu0 %v251
  %v332 = vpop.f32.mrb[0].mxu0
  %v333 = vadd.f32 0.0, %v332
  %v334 = vpop.f32.mrb[0].mxu0
  %335 = vmatprep.mubr.f32.mxu0 0.0
  %336 = vmatmul.mubr.f32.gmra.mrb[0].mxu0 %v254
  %v337 = vpop.f32.mrb[0].mxu0
  %v338 = vadd.f32 0.0, %v337
  %v339 = vpop.f32.mrb[0].mxu0
  %340 = vdwg.mxu0
  %343 = vrot.lane.b32.xlu0 %v226, 112
  %v344 = vpop.permute.xlu0 %343
  %345 = vrot.lane.b32.xlu0 %v231, 112
  %v346 = vpop.permute.xlu0 %345
  %v349 = vadd.f32 %v323, %v344
  %v350 = vadd.f32 %v328, %v346
  %353 = vrot.lane.b32.xlu0 %v333, 96
  %v354 = vpop.permute.xlu0 %353
  %355 = vrot.lane.b32.xlu0 %v338, 96
  %v356 = vpop.permute.xlu0 %355
  %v359 = vadd.f32 %v349, %v354
  %v360 = vadd.f32 %v350, %v356
  %v362 = vsel %vm23, %v100, 0
  %v365 = vsel %vm23, %v101, 0
  %v368 = vsel %vm23, %v120, 0
  %v371 = vsel %vm23, %v121, 0
  %373 = vmatprep.subr.mxu0 0.0
  %374 = vmatpush1.msra.mxu0 %v236
  %375 = vmatprep.subr.mxu0 0.0
  %376 = vmatpush1.msra.mxu0 %v241
  %377 = vmatprep.subr.mxu0 0.0
  %378 = vmatpush1.msra.mxu0 0.0
  %379 = vmatprep.subr.mxu0 0.0
  %380 = vmatpush1.msra.mxu0 0.0
  %381 = vmatprep.subr.mxu0 0.0
  %382 = vmatpush1.msra.mxu0 0.0
  %383 = vmatprep.subr.mxu0 0.0
  %384 = vmatpush1.msra.mxu0 0.0
  %385 = vmatprep.subr.mxu0 0.0
  %386 = vmatpush1.msra.mxu0 0.0
  %387 = vmatprep.subr.mxu0 0.0
  %388 = vmatpush1.msra.mxu0 0.0
  %389 = vmatprep.subr.mxu0 0.0
  %390 = vmatpush1.msra.mxu0 0.0
  %391 = vmatprep.subr.mxu0 0.0
  %392 = vmatpush1.msra.mxu0 0.0
  %393 = vmatprep.subr.mxu0 0.0
  %394 = vmatpush1.msra.mxu0 0.0
  %395 = vmatprep.subr.mxu0 0.0
  %396 = vmatpush1.msra.mxu0 0.0
  %397 = vmatprep.subr.mxu0 0.0
  %398 = vmatpush1.msra.mxu0 0.0
  %399 = vmatprep.subr.mxu0 0.0
  %400 = vmatpush1.msra.mxu0 0.0
  %401 = vmatprep.subr.mxu0 0.0
  %402 = vmatpush1.msra.mxu0 0.0
  %403 = vmatprep.subr.mxu0 0.0
  %404 = vmatpush1.msra.mxu0 0.0
  %405 = vmatprep.subr.mxu0 0.0
  %406 = vmatpush1.msra.mxu0 0.0
  %407 = vmatprep.subr.mxu0 0.0
  %408 = vmatpush1.msra.mxu0 0.0
  %409 = vmatprep.subr.mxu0 0.0
  %410 = vmatpush1.msra.mxu0 0.0
  %411 = vmatprep.subr.mxu0 0.0
  %412 = vmatpush1.msra.mxu0 0.0
  %413 = vmatprep.subr.mxu0 0.0
  %414 = vmatpush1.msra.mxu0 0.0
  %415 = vmatprep.subr.mxu0 0.0
  %416 = vmatpush1.msra.mxu0 0.0
  %417 = vmatprep.subr.mxu0 0.0
  %418 = vmatpush1.msra.mxu0 0.0
  %419 = vmatprep.subr.mxu0 0.0
  %420 = vmatpush1.msra.mxu0 0.0
  %421 = vmatprep.subr.mxu0 0.0
  %422 = vmatpush1.msra.mxu0 0.0
  %423 = vmatprep.subr.mxu0 0.0
  %424 = vmatpush1.msra.mxu0 0.0
  %425 = vmatprep.subr.mxu0 0.0
  %426 = vmatpush1.msra.mxu0 0.0
  %427 = vmatprep.subr.mxu0 0.0
  %428 = vmatpush1.msra.mxu0 0.0
  %429 = vmatprep.subr.mxu0 0.0
  %430 = vmatpush1.msra.mxu0 0.0
  %431 = vmatprep.subr.mxu0 0.0
  %432 = vmatpush1.msra.mxu0 0.0
  %433 = vmatprep.subr.mxu0 0.0
  %434 = vmatpush1.msra.mxu0 0.0
  %435 = vmatprep.subr.mxu0 0.0
  %436 = vmatpush1.msra.mxu0 0.0
  %437 = vmatprep.mubr.f32.mxu0 0.0
  %438 = vmatmul.mubr.f32.gmra.mrb[0].mxu0 %v362
  %v439 = vpop.f32.mrb[0].mxu0
  %v440 = vadd.f32 0.0, %v439
  %v441 = vpop.f32.mrb[0].mxu0
  %442 = vmatprep.mubr.f32.mxu0 0.0
  %443 = vmatmul.mubr.f32.gmra.mrb[0].mxu0 %v365
  %v444 = vpop.f32.mrb[0].mxu0
  %v445 = vadd.f32 0.0, %v444
  %v446 = vpop.f32.mrb[0].mxu0
  %447 = vmatprep.mubr.f32.mxu0 0.0
  %448 = vmatmul.mubr.f32.gmra.mrb[0].mxu0 %v368
  %v449 = vpop.f32.mrb[0].mxu0
  %v450 = vadd.f32 0.0, %v449
  %v451 = vpop.f32.mrb[0].mxu0
  %452 = vmatprep.mubr.f32.mxu0 0.0
  %453 = vmatmul.mubr.f32.gmra.mrb[0].mxu0 %v371
  %v454 = vpop.f32.mrb[0].mxu0
  %v455 = vadd.f32 0.0, %v454
  %v456 = vpop.f32.mrb[0].mxu0
  %457 = vdwg.mxu0
  %460 = vrot.lane.b32.xlu0 %v236, 112
  %v461 = vpop.permute.xlu0 %460
  %462 = vrot.lane.b32.xlu0 %v241, 112
  %v463 = vpop.permute.xlu0 %462
  %v466 = vadd.f32 %v440, %v461
  %v467 = vadd.f32 %v445, %v463
  %470 = vrot.lane.b32.xlu0 %v450, 96
  %v471 = vpop.permute.xlu0 %470
  %472 = vrot.lane.b32.xlu0 %v455, 96
  %v473 = vpop.permute.xlu0 %472
  %v476 = vadd.f32 %v466, %v471
  %v477 = vadd.f32 %v467, %v473
  %v478 = vmax.f32 %v359, 0.0
  %v479 = vmax.f32 %v360, 0.0
  %v480 = vmax.f32 %v476, 0.0
  %v481 = vmax.f32 %v477, 0.0
  %v482 = vld [vmem:[%s2 + $0x8] sm:$0xff]
  %v483 = vld [vmem:[%s2 + $0x10] sm:$0xff]
  %v484 = vld [vmem:[%s3 + $0x1] sm:$0x1]
  %v485 = vlaneseq
  %v486 = vshrl.u32 %v485, 7
  %v487 = vsub.s32 0, %v486
  %v488 = vrot.slane %v484, %v487
  %v490 = vsel %vm23, %v478, 0
  %v493 = vsel %vm23, %v479, 0
  %v496 = vsel %vm23, %v480, 0
  %v499 = vsel %vm23, %v481, 0
  %501 = vmatprep.subr.mxu0 0.0
  %502 = vmatpush1.msra.mxu0 %v482
  %503 = vmatprep.subr.mxu0 0.0
  %504 = vmatpush1.msra.mxu0 %v483
  %505 = vmatprep.subr.mxu0 0.0
  %506 = vmatpush1.msra.mxu0 0.0
  %507 = vmatprep.subr.mxu0 0.0
  %508 = vmatpush1.msra.mxu0 0.0
  %509 = vmatprep.subr.mxu0 0.0
  %510 = vmatpush1.msra.mxu0 0.0
  %511 = vmatprep.subr.mxu0 0.0
  %512 = vmatpush1.msra.mxu0 0.0
  %513 = vmatprep.subr.mxu0 0.0
  %514 = vmatpush1.msra.mxu0 0.0
  %515 = vmatprep.subr.mxu0 0.0
  %516 = vmatpush1.msra.mxu0 0.0
  %517 = vmatprep.subr.mxu0 0.0
  %518 = vmatpush1.msra.mxu0 0.0
  %519 = vmatprep.subr.mxu0 0.0
  %520 = vmatpush1.msra.mxu0 0.0
  %521 = vmatprep.subr.mxu0 0.0
  %522 = vmatpush1.msra.mxu0 0.0
  %523 = vmatprep.subr.mxu0 0.0
  %524 = vmatpush1.msra.mxu0 0.0
  %525 = vmatprep.subr.mxu0 0.0
  %526 = vmatpush1.msra.mxu0 0.0
  %527 = vmatprep.subr.mxu0 0.0
  %528 = vmatpush1.msra.mxu0 0.0
  %529 = vmatprep.subr.mxu0 0.0
  %530 = vmatpush1.msra.mxu0 0.0
  %531 = vmatprep.subr.mxu0 0.0
  %532 = vmatpush1.msra.mxu0 0.0
  %533 = vmatprep.subr.mxu0 0.0
  %534 = vmatpush1.msra.mxu0 0.0
  %535 = vmatprep.subr.mxu0 0.0
  %536 = vmatpush1.msra.mxu0 0.0
  %537 = vmatprep.subr.mxu0 0.0
  %538 = vmatpush1.msra.mxu0 0.0
  %539 = vmatprep.subr.mxu0 0.0
  %540 = vmatpush1.msra.mxu0 0.0
  %541 = vmatprep.subr.mxu0 0.0
  %542 = vmatpush1.msra.mxu0 0.0
  %543 = vmatprep.subr.mxu0 0.0
  %544 = vmatpush1.msra.mxu0 0.0
  %545 = vmatprep.subr.mxu0 0.0
  %546 = vmatpush1.msra.mxu0 0.0
  %547 = vmatprep.subr.mxu0 0.0
  %548 = vmatpush1.msra.mxu0 0.0
  %549 = vmatprep.subr.mxu0 0.0
  %550 = vmatpush1.msra.mxu0 0.0
  %551 = vmatprep.subr.mxu0 0.0
  %552 = vmatpush1.msra.mxu0 0.0
  %553 = vmatprep.subr.mxu0 0.0
  %554 = vmatpush1.msra.mxu0 0.0
  %555 = vmatprep.subr.mxu0 0.0
  %556 = vmatpush1.msra.mxu0 0.0
  %557 = vmatprep.subr.mxu0 0.0
  %558 = vmatpush1.msra.mxu0 0.0
  %559 = vmatprep.subr.mxu0 0.0
  %560 = vmatpush1.msra.mxu0 0.0
  %561 = vmatprep.subr.mxu0 0.0
  %562 = vmatpush1.msra.mxu0 0.0
  %563 = vmatprep.subr.mxu0 0.0
  %564 = vmatpush1.msra.mxu0 0.0
  %565 = vmatprep.mubr.f32.mxu0 0.0
  %566 = vmatmul.mubr.f32.gmra.mrb[0].mxu0 %v490
  %v567 = vpop.f32.mrb[0].mxu0
  %v568 = vadd.f32 %v488, %v567
  %v569 = vpop.f32.mrb[0].mxu0
  %570 = vmatprep.mubr.f32.mxu0 0.0
  %571 = vmatmul.mubr.f32.gmra.mrb[0].mxu0 %v493
  %v572 = vpop.f32.mrb[0].mxu0
  %v573 = vadd.f32 %v488, %v572
  %v574 = vpop.f32.mrb[0].mxu0
  %575 = vmatprep.mubr.f32.mxu0 0.0
  %576 = vmatmul.mubr.f32.gmra.mrb[0].mxu0 %v496
  %v577 = vpop.f32.mrb[0].mxu0
  %v578 = vadd.f32 %v488, %v577
  %v579 = vpop.f32.mrb[0].mxu0
  %580 = vmatprep.mubr.f32.mxu0 0.0
  %581 = vmatmul.mubr.f32.gmra.mrb[0].mxu0 %v499
  %v582 = vpop.f32.mrb[0].mxu0
  %v583 = vadd.f32 %v488, %v582
  %v584 = vpop.f32.mrb[0].mxu0
  %585 = vdwg.mxu0
  %586 = vmatprep.subr.mxu0 0.0
  %587 = vmatpush1.msra.mxu0 %v568
  %588 = vmatprep.subr.mxu0 0.0
  %589 = vmatpush1.msra.mxu0 %v573
  %590 = vmatprep.subr.mxu0 0.0
  %591 = vmatpush1.msra.mxu0 0.0
  %592 = vmatprep.subr.mxu0 0.0
  %593 = vmatpush1.msra.mxu0 0.0
  %594 = vmatprep.subr.mxu0 0.0
  %595 = vmatpush1.msra.mxu0 0.0
  %596 = vmatprep.subr.mxu0 0.0
  %597 = vmatpush1.msra.mxu0 0.0
  %598 = vmatprep.subr.mxu0 0.0
  %599 = vmatpush1.msra.mxu0 0.0
  %600 = vmatprep.subr.mxu0 0.0
  %601 = vmatpush1.msra.mxu0 0.0
  %602 = vmatprep.subr.mxu0 0.0
  %603 = vmatpush1.msra.mxu0 0.0
  %604 = vmatprep.subr.mxu0 0.0
  %605 = vmatpush1.msra.mxu0 0.0
  %606 = vmatprep.subr.mxu0 0.0
  %607 = vmatpush1.msra.mxu0 0.0
  %608 = vmatprep.subr.mxu0 0.0
  %609 = vmatpush1.msra.mxu0 0.0
  %610 = vmatprep.subr.mxu0 0.0
  %611 = vmatpush1.msra.mxu0 0.0
  %612 = vmatprep.subr.mxu0 0.0
  %613 = vmatpush1.msra.mxu0 0.0
  %614 = vmatprep.subr.mxu0 0.0
  %615 = vmatpush1.msra.mxu0 0.0
  %616 = vmatprep.subr.mxu0 0.0
  %617 = vmatpush1.msra.mxu0 0.0
  %618 = vmatprep.subr.mxu0 0.0
  %619 = vmatpush1.msra.mxu0 0.0
  %620 = vmatprep.subr.mxu0 0.0
  %621 = vmatpush1.msra.mxu0 0.0
  %622 = vmatprep.subr.mxu0 0.0
  %623 = vmatpush1.msra.mxu0 0.0
  %624 = vmatprep.subr.mxu0 0.0
  %625 = vmatpush1.msra.mxu0 0.0
  %626 = vmatprep.subr.mxu0 0.0
  %627 = vmatpush1.msra.mxu0 0.0
  %628 = vmatprep.subr.mxu0 0.0
  %629 = vmatpush1.msra.mxu0 0.0
  %630 = vmatprep.subr.mxu0 0.0
  %631 = vmatpush1.msra.mxu0 0.0
  %632 = vmatprep.subr.mxu0 0.0
  %633 = vmatpush1.msra.mxu0 0.0
  %634 = vmatprep.subr.mxu0 0.0
  %635 = vmatpush1.msra.mxu0 0.0
  %636 = vmatprep.subr.mxu0 0.0
  %637 = vmatpush1.msra.mxu0 0.0
  %638 = vmatprep.subr.mxu0 0.0
  %639 = vmatpush1.msra.mxu0 0.0
  %640 = vmatprep.subr.mxu0 0.0
  %641 = vmatpush1.msra.mxu0 0.0
  %642 = vmatprep.subr.mxu0 0.0
  %643 = vmatpush1.msra.mxu0 0.0
  %644 = vmatprep.subr.mxu0 0.0
  %645 = vmatpush1.msra.mxu0 0.0
  %646 = vmatprep.subr.mxu0 0.0
  %647 = vmatpush1.msra.mxu0 0.0
  %648 = vmatprep.subr.mxu0 0.0
  %649 = vmatpush1.msra.mxu0 0.0
  %650 = vmatprep.mubr.f32.mxu0 0.0
  %651 = vmatmul.mubr.f32.gmra.mrb[0].mxu0 %v245
  %v652 = vpop.f32.mrb[0].mxu0
  %v653 = vadd.f32 0.0, %v652
  %v654 = vpop.f32.mrb[0].mxu0
  %655 = vmatprep.mubr.f32.mxu0 0.0
  %656 = vmatmul.mubr.f32.gmra.mrb[0].mxu0 %v248
  %v657 = vpop.f32.mrb[0].mxu0
  %v658 = vadd.f32 0.0, %v657
  %v659 = vpop.f32.mrb[0].mxu0
  %660 = vmatprep.mubr.f32.mxu0 0.0
  %661 = vmatmul.mubr.f32.gmra.mrb[0].mxu0 %v251
  %v662 = vpop.f32.mrb[0].mxu0
  %v663 = vadd.f32 0.0, %v662
  %v664 = vpop.f32.mrb[0].mxu0
  %665 = vmatprep.mubr.f32.mxu0 0.0
  %666 = vmatmul.mubr.f32.gmra.mrb[0].mxu0 %v254
  %v667 = vpop.f32.mrb[0].mxu0
  %v668 = vadd.f32 0.0, %v667
  %v669 = vpop.f32.mrb[0].mxu0
  %670 = vdwg.mxu0
  %673 = vrot.lane.b32.xlu0 %v568, 112
  %v674 = vpop.permute.xlu0 %673
  %675 = vrot.lane.b32.xlu0 %v573, 112
  %v676 = vpop.permute.xlu0 %675
  %v679 = vadd.f32 %v653, %v674
  %v680 = vadd.f32 %v658, %v676
  %683 = vrot.lane.b32.xlu0 %v663, 96
  %v684 = vpop.permute.xlu0 %683
  %685 = vrot.lane.b32.xlu0 %v668, 96
  %v686 = vpop.permute.xlu0 %685
  %v689 = vadd.f32 %v679, %v684
  %v690 = vadd.f32 %v680, %v686
  %691 = vmatprep.subr.mxu0 0.0
  %692 = vmatpush1.msra.mxu0 %v578
  %693 = vmatprep.subr.mxu0 0.0
  %694 = vmatpush1.msra.mxu0 %v583
  %695 = vmatprep.subr.mxu0 0.0
  %696 = vmatpush1.msra.mxu0 0.0
  %697 = vmatprep.subr.mxu0 0.0
  %698 = vmatpush1.msra.mxu0 0.0
  %699 = vmatprep.subr.mxu0 0.0
  %700 = vmatpush1.msra.mxu0 0.0
  %701 = vmatprep.subr.mxu0 0.0
  %702 = vmatpush1.msra.mxu0 0.0
  %703 = vmatprep.subr.mxu0 0.0
  %704 = vmatpush1.msra.mxu0 0.0
  %705 = vmatprep.subr.mxu0 0.0
  %706 = vmatpush1.msra.mxu0 0.0
  %707 = vmatprep.subr.mxu0 0.0
  %708 = vmatpush1.msra.mxu0 0.0
  %709 = vmatprep.subr.mxu0 0.0
  %710 = vmatpush1.msra.mxu0 0.0
  %711 = vmatprep.subr.mxu0 0.0
  %712 = vmatpush1.msra.mxu0 0.0
  %713 = vmatprep.subr.mxu0 0.0
  %714 = vmatpush1.msra.mxu0 0.0
  %715 = vmatprep.subr.mxu0 0.0
  %716 = vmatpush1.msra.mxu0 0.0
  %717 = vmatprep.subr.mxu0 0.0
  %718 = vmatpush1.msra.mxu0 0.0
  %719 = vmatprep.subr.mxu0 0.0
  %720 = vmatpush1.msra.mxu0 0.0
  %721 = vmatprep.subr.mxu0 0.0
  %722 = vmatpush1.msra.mxu0 0.0
  %723 = vmatprep.subr.mxu0 0.0
  %724 = vmatpush1.msra.mxu0 0.0
  %725 = vmatprep.subr.mxu0 0.0
  %726 = vmatpush1.msra.mxu0 0.0
  %727 = vmatprep.subr.mxu0 0.0
  %728 = vmatpush1.msra.mxu0 0.0
  %729 = vmatprep.subr.mxu0 0.0
  %730 = vmatpush1.msra.mxu0 0.0
  %731 = vmatprep.subr.mxu0 0.0
  %732 = vmatpush1.msra.mxu0 0.0
  %733 = vmatprep.subr.mxu0 0.0
  %734 = vmatpush1.msra.mxu0 0.0
  %735 = vmatprep.subr.mxu0 0.0
  %736 = vmatpush1.msra.mxu0 0.0
  %737 = vmatprep.subr.mxu0 0.0
  %738 = vmatpush1.msra.mxu0 0.0
  %739 = vmatprep.subr.mxu0 0.0
  %740 = vmatpush1.msra.mxu0 0.0
  %741 = vmatprep.subr.mxu0 0.0
  %742 = vmatpush1.msra.mxu0 0.0
  %743 = vmatprep.subr.mxu0 0.0
  %744 = vmatpush1.msra.mxu0 0.0
  %745 = vmatprep.subr.mxu0 0.0
  %746 = vmatpush1.msra.mxu0 0.0
  %747 = vmatprep.subr.mxu0 0.0
  %748 = vmatpush1.msra.mxu0 0.0
  %749 = vmatprep.subr.mxu0 0.0
  %750 = vmatpush1.msra.mxu0 0.0
  %751 = vmatprep.subr.mxu0 0.0
  %752 = vmatpush1.msra.mxu0 0.0
  %753 = vmatprep.subr.mxu0 0.0
  %754 = vmatpush1.msra.mxu0 0.0
  %755 = vmatprep.mubr.f32.mxu0 0.0
  %756 = vmatmul.mubr.f32.gmra.mrb[0].mxu0 %v362
  %v757 = vpop.f32.mrb[0].mxu0
  %v758 = vadd.f32 0.0, %v757
  %v759 = vpop.f32.mrb[0].mxu0
  %760 = vmatprep.mubr.f32.mxu0 0.0
  %761 = vmatmul.mubr.f32.gmra.mrb[0].mxu0 %v365
  %v762 = vpop.f32.mrb[0].mxu0
  %v763 = vadd.f32 0.0, %v762
  %v764 = vpop.f32.mrb[0].mxu0
  %765 = vmatprep.mubr.f32.mxu0 0.0
  %766 = vmatmul.mubr.f32.gmra.mrb[0].mxu0 %v368
  %v767 = vpop.f32.mrb[0].mxu0
  %v768 = vadd.f32 0.0, %v767
  %v769 = vpop.f32.mrb[0].mxu0
  %770 = vmatprep.mubr.f32.mxu0 0.0
  %771 = vmatmul.mubr.f32.gmra.mrb[0].mxu0 %v371
  %v772 = vpop.f32.mrb[0].mxu0
  %v773 = vadd.f32 0.0, %v772
  %v774 = vpop.f32.mrb[0].mxu0
  %775 = vdwg.mxu0
  %778 = vrot.lane.b32.xlu0 %v578, 112
  %v779 = vpop.permute.xlu0 %778
  %780 = vrot.lane.b32.xlu0 %v583, 112
  %v781 = vpop.permute.xlu0 %780
  %v784 = vadd.f32 %v758, %v779
  %v785 = vadd.f32 %v763, %v781
  %788 = vrot.lane.b32.xlu0 %v768, 96
  %v789 = vpop.permute.xlu0 %788
  %790 = vrot.lane.b32.xlu0 %v773, 96
  %v791 = vpop.permute.xlu0 %790
  %v794 = vadd.f32 %v784, %v789
  %v795 = vadd.f32 %v785, %v791
  %v796 = vmax.f32 %v689, 0.0
  %v797 = vmax.f32 %v690, 0.0
  %v798 = vmax.f32 %v794, 0.0
  %v799 = vmax.f32 %v795, 0.0
  %v800 = vld [vmem:[%s2 + $0x18] sm:$0xff]
  %v801 = vld [vmem:[%s2 + $0x20] sm:$0xff]
  %v802 = vld [vmem:[%s2 + $0x28] sm:$0xff]
  %v803 = vld [vmem:[%s2 + $0x30] sm:$0xff]
  %804 = vmatprep.subr.mxu0 0.0
  %805 = vmatpush1.msra.mxu0 %v802
  %806 = vmatprep.subr.mxu0 0.0
  %807 = vmatpush1.msra.mxu0 %v803
  %808 = vmatprep.subr.mxu0 0.0
  %809 = vmatpush1.msra.mxu0 0.0
  %810 = vmatprep.subr.mxu0 0.0
  %811 = vmatpush1.msra.mxu0 0.0
  %812 = vmatprep.subr.mxu0 0.0
  %813 = vmatpush1.msra.mxu0 0.0
  %814 = vmatprep.subr.mxu0 0.0
  %815 = vmatpush1.msra.mxu0 0.0
  %816 = vmatprep.subr.mxu0 0.0
  %817 = vmatpush1.msra.mxu0 0.0
  %818 = vmatprep.subr.mxu0 0.0
  %819 = vmatpush1.msra.mxu0 0.0
  %820 = vmatprep.subr.mxu0 0.0
  %821 = vmatpush1.msra.mxu0 0.0
  %822 = vmatprep.subr.mxu0 0.0
  %823 = vmatpush1.msra.mxu0 0.0
  %824 = vmatprep.subr.mxu0 0.0
  %825 = vmatpush1.msra.mxu0 0.0
  %826 = vmatprep.subr.mxu0 0.0
  %827 = vmatpush1.msra.mxu0 0.0
  %828 = vmatprep.subr.mxu0 0.0
  %829 = vmatpush1.msra.mxu0 0.0
  %830 = vmatprep.subr.mxu0 0.0
  %831 = vmatpush1.msra.mxu0 0.0
  %832 = vmatprep.subr.mxu0 0.0
  %833 = vmatpush1.msra.mxu0 0.0
  %834 = vmatprep.subr.mxu0 0.0
  %835 = vmatpush1.msra.mxu0 0.0
  %836 = vmatprep.subr.mxu0 0.0
  %837 = vmatpush1.msra.mxu0 0.0
  %838 = vmatprep.subr.mxu0 0.0
  %839 = vmatpush1.msra.mxu0 0.0
  %840 = vmatprep.subr.mxu0 0.0
  %841 = vmatpush1.msra.mxu0 0.0
  %842 = vmatprep.subr.mxu0 0.0
  %843 = vmatpush1.msra.mxu0 0.0
  %844 = vmatprep.subr.mxu0 0.0
  %845 = vmatpush1.msra.mxu0 0.0
  %846 = vmatprep.subr.mxu0 0.0
  %847 = vmatpush1.msra.mxu0 0.0
  %848 = vmatprep.subr.mxu0 0.0
  %849 = vmatpush1.msra.mxu0 0.0
  %850 = vmatprep.subr.mxu0 0.0
  %851 = vmatpush1.msra.mxu0 0.0
  %852 = vmatprep.subr.mxu0 0.0
  %853 = vmatpush1.msra.mxu0 0.0
  %854 = vmatprep.subr.mxu0 0.0
  %855 = vmatpush1.msra.mxu0 0.0
  %856 = vmatprep.subr.mxu0 0.0
  %857 = vmatpush1.msra.mxu0 0.0
  %858 = vmatprep.subr.mxu0 0.0
  %859 = vmatpush1.msra.mxu0 0.0
  %860 = vmatprep.subr.mxu0 0.0
  %861 = vmatpush1.msra.mxu0 0.0
  %862 = vmatprep.subr.mxu0 0.0
  %863 = vmatpush1.msra.mxu0 0.0
  %864 = vmatprep.subr.mxu0 0.0
  %865 = vmatpush1.msra.mxu0 0.0
  %866 = vmatprep.subr.mxu0 0.0
  %867 = vmatpush1.msra.mxu0 0.0
  %868 = vmatprep.mubr.f32.mxu0 0.0
  %869 = vmatmul.mubr.f32.gmra.mrb[0].mxu0 %v490
  %v870 = vpop.f32.mrb[0].mxu0
  %v871 = vadd.f32 0.0, %v870
  %v872 = vpop.f32.mrb[0].mxu0
  %873 = vmatprep.mubr.f32.mxu0 0.0
  %874 = vmatmul.mubr.f32.gmra.mrb[0].mxu0 %v493
  %v875 = vpop.f32.mrb[0].mxu0
  %v876 = vadd.f32 0.0, %v875
  %v877 = vpop.f32.mrb[0].mxu0
  %878 = vmatprep.mubr.f32.mxu0 0.0
  %879 = vmatmul.mubr.f32.gmra.mrb[0].mxu0 %v496
  %v880 = vpop.f32.mrb[0].mxu0
  %v881 = vadd.f32 0.0, %v880
  %v882 = vpop.f32.mrb[0].mxu0
  %883 = vmatprep.mubr.f32.mxu0 0.0
  %884 = vmatmul.mubr.f32.gmra.mrb[0].mxu0 %v499
  %v885 = vpop.f32.mrb[0].mxu0
  %v886 = vadd.f32 0.0, %v885
  %v887 = vpop.f32.mrb[0].mxu0
  %888 = vdwg.mxu0
  %v890 = vsel %vm23, %v796, 0
  %v893 = vsel %vm23, %v797, 0
  %v896 = vsel %vm23, %v798, 0
  %v899 = vsel %vm23, %v799, 0
  %901 = vmatprep.subr.mxu0 0.0
  %902 = vmatpush1.msra.mxu0 %v800
  %903 = vmatprep.subr.mxu0 0.0
  %904 = vmatpush1.msra.mxu0 %v801
  %905 = vmatprep.subr.mxu0 0.0
  %906 = vmatpush1.msra.mxu0 0.0
  %907 = vmatprep.subr.mxu0 0.0
  %908 = vmatpush1.msra.mxu0 0.0
  %909 = vmatprep.subr.mxu0 0.0
  %910 = vmatpush1.msra.mxu0 0.0
  %911 = vmatprep.subr.mxu0 0.0
  %912 = vmatpush1.msra.mxu0 0.0
  %913 = vmatprep.subr.mxu0 0.0
  %914 = vmatpush1.msra.mxu0 0.0
  %915 = vmatprep.subr.mxu0 0.0
  %916 = vmatpush1.msra.mxu0 0.0
  %917 = vmatprep.subr.mxu0 0.0
  %918 = vmatpush1.msra.mxu0 0.0
  %919 = vmatprep.subr.mxu0 0.0
  %920 = vmatpush1.msra.mxu0 0.0
  %921 = vmatprep.subr.mxu0 0.0
  %922 = vmatpush1.msra.mxu0 0.0
  %923 = vmatprep.subr.mxu0 0.0
  %924 = vmatpush1.msra.mxu0 0.0
  %925 = vmatprep.subr.mxu0 0.0
  %926 = vmatpush1.msra.mxu0 0.0
  %927 = vmatprep.subr.mxu0 0.0
  %928 = vmatpush1.msra.mxu0 0.0
  %929 = vmatprep.subr.mxu0 0.0
  %930 = vmatpush1.msra.mxu0 0.0
  %931 = vmatprep.subr.mxu0 0.0
  %932 = vmatpush1.msra.mxu0 0.0
  %933 = vmatprep.subr.mxu0 0.0
  %934 = vmatpush1.msra.mxu0 0.0
  %935 = vmatprep.subr.mxu0 0.0
  %936 = vmatpush1.msra.mxu0 0.0
  %937 = vmatprep.subr.mxu0 0.0
  %938 = vmatpush1.msra.mxu0 0.0
  %939 = vmatprep.subr.mxu0 0.0
  %940 = vmatpush1.msra.mxu0 0.0
  %941 = vmatprep.subr.mxu0 0.0
  %942 = vmatpush1.msra.mxu0 0.0
  %943 = vmatprep.subr.mxu0 0.0
  %944 = vmatpush1.msra.mxu0 0.0
  %945 = vmatprep.subr.mxu0 0.0
  %946 = vmatpush1.msra.mxu0 0.0
  %947 = vmatprep.subr.mxu0 0.0
  %948 = vmatpush1.msra.mxu0 0.0
  %949 = vmatprep.subr.mxu0 0.0
  %950 = vmatpush1.msra.mxu0 0.0
  %951 = vmatprep.subr.mxu0 0.0
  %952 = vmatpush1.msra.mxu0 0.0
  %953 = vmatprep.subr.mxu0 0.0
  %954 = vmatpush1.msra.mxu0 0.0
  %955 = vmatprep.subr.mxu0 0.0
  %956 = vmatpush1.msra.mxu0 0.0
  %957 = vmatprep.subr.mxu0 0.0
  %958 = vmatpush1.msra.mxu0 0.0
  %959 = vmatprep.subr.mxu0 0.0
  %960 = vmatpush1.msra.mxu0 0.0
  %961 = vmatprep.subr.mxu0 0.0
  %962 = vmatpush1.msra.mxu0 0.0
  %963 = vmatprep.subr.mxu0 0.0
  %964 = vmatpush1.msra.mxu0 0.0
  %965 = vmatprep.mubr.f32.mxu0 0.0
  %966 = vmatmul.mubr.f32.gmra.mrb[0].mxu0 %v890
  %v967 = vpop.f32.mrb[0].mxu0
  %v968 = vadd.f32 %v871, %v967
  %v969 = vpop.f32.mrb[0].mxu0
  %970 = vmatprep.mubr.f32.mxu0 0.0
  %971 = vmatmul.mubr.f32.gmra.mrb[0].mxu0 %v893
  %v972 = vpop.f32.mrb[0].mxu0
  %v973 = vadd.f32 %v876, %v972
  %v974 = vpop.f32.mrb[0].mxu0
  %975 = vmatprep.mubr.f32.mxu0 0.0
  %976 = vmatmul.mubr.f32.gmra.mrb[0].mxu0 %v896
  %v977 = vpop.f32.mrb[0].mxu0
  %v978 = vadd.f32 %v881, %v977
  %v979 = vpop.f32.mrb[0].mxu0
  %980 = vmatprep.mubr.f32.mxu0 0.0
  %981 = vmatmul.mubr.f32.gmra.mrb[0].mxu0 %v899
  %v982 = vpop.f32.mrb[0].mxu0
  %v983 = vadd.f32 %v886, %v982
  %v984 = vpop.f32.mrb[0].mxu0
  %985 = vdwg.mxu0
  %v986 = vld [vmem:[%s3 + $0x2] sm:$0x1]
  %v987 = vlaneseq
  %v988 = vshrl.u32 %v987, 7
  %v989 = vsub.s32 0, %v988
  %v990 = vrot.slane %v986, %v989
  %v991 = vadd.f32 %v968, %v990
  %v992 = vadd.f32 %v973, %v990
  %v993 = vadd.f32 %v978, %v990
  %v994 = vadd.f32 %v983, %v990
  %995 = vmatprep.subr.mxu0 0.0
  %996 = vmatpush1.msra.mxu0 %v991
  %997 = vmatprep.subr.mxu0 0.0
  %998 = vmatpush1.msra.mxu0 %v992
  %999 = vmatprep.subr.mxu0 0.0
  %1000 = vmatpush1.msra.mxu0 0.0
  %1001 = vmatprep.subr.mxu0 0.0
  %1002 = vmatpush1.msra.mxu0 0.0
  %1003 = vmatprep.subr.mxu0 0.0
  %1004 = vmatpush1.msra.mxu0 0.0
  %1005 = vmatprep.subr.mxu0 0.0
  %1006 = vmatpush1.msra.mxu0 0.0
  %1007 = vmatprep.subr.mxu0 0.0
  %1008 = vmatpush1.msra.mxu0 0.0
  %1009 = vmatprep.subr.mxu0 0.0
  %1010 = vmatpush1.msra.mxu0 0.0
  %1011 = vmatprep.subr.mxu0 0.0
  %1012 = vmatpush1.msra.mxu0 0.0
  %1013 = vmatprep.subr.mxu0 0.0
  %1014 = vmatpush1.msra.mxu0 0.0
  %1015 = vmatprep.subr.mxu0 0.0
  %1016 = vmatpush1.msra.mxu0 0.0
  %1017 = vmatprep.subr.mxu0 0.0
  %1018 = vmatpush1.msra.mxu0 0.0
  %1019 = vmatprep.subr.mxu0 0.0
  %1020 = vmatpush1.msra.mxu0 0.0
  %1021 = vmatprep.subr.mxu0 0.0
  %1022 = vmatpush1.msra.mxu0 0.0
  %1023 = vmatprep.subr.mxu0 0.0
  %1024 = vmatpush1.msra.mxu0 0.0
  %1025 = vmatprep.subr.mxu0 0.0
  %1026 = vmatpush1.msra.mxu0 0.0
  %1027 = vmatprep.subr.mxu0 0.0
  %1028 = vmatpush1.msra.mxu0 0.0
  %1029 = vmatprep.subr.mxu0 0.0
  %1030 = vmatpush1.msra.mxu0 0.0
  %1031 = vmatprep.subr.mxu0 0.0
  %1032 = vmatpush1.msra.mxu0 0.0
  %1033 = vmatprep.subr.mxu0 0.0
  %1034 = vmatpush1.msra.mxu0 0.0
  %1035 = vmatprep.subr.mxu0 0.0
  %1036 = vmatpush1.msra.mxu0 0.0
  %1037 = vmatprep.subr.mxu0 0.0
  %1038 = vmatpush1.msra.mxu0 0.0
  %1039 = vmatprep.subr.mxu0 0.0
  %1040 = vmatpush1.msra.mxu0 0.0
  %1041 = vmatprep.subr.mxu0 0.0
  %1042 = vmatpush1.msra.mxu0 0.0
  %1043 = vmatprep.subr.mxu0 0.0
  %1044 = vmatpush1.msra.mxu0 0.0
  %1045 = vmatprep.subr.mxu0 0.0
  %1046 = vmatpush1.msra.mxu0 0.0
  %1047 = vmatprep.subr.mxu0 0.0
  %1048 = vmatpush1.msra.mxu0 0.0
  %1049 = vmatprep.subr.mxu0 0.0
  %1050 = vmatpush1.msra.mxu0 0.0
  %1051 = vmatprep.subr.mxu0 0.0
  %1052 = vmatpush1.msra.mxu0 0.0
  %1053 = vmatprep.subr.mxu0 0.0
  %1054 = vmatpush1.msra.mxu0 0.0
  %1055 = vmatprep.subr.mxu0 0.0
  %1056 = vmatpush1.msra.mxu0 0.0
  %1057 = vmatprep.subr.mxu0 0.0
  %1058 = vmatpush1.msra.mxu0 0.0
  %1059 = vmatprep.mubr.f32.mxu0 0.0
  %1060 = vmatmul.mubr.f32.gmra.mrb[0].mxu0 %v245
  %v1061 = vpop.f32.mrb[0].mxu0
  %v1062 = vadd.f32 0.0, %v1061
  %v1063 = vpop.f32.mrb[0].mxu0
  %1064 = vmatprep.mubr.f32.mxu0 0.0
  %1065 = vmatmul.mubr.f32.gmra.mrb[0].mxu0 %v248
  %v1066 = vpop.f32.mrb[0].mxu0
  %v1067 = vadd.f32 0.0, %v1066
  %v1068 = vpop.f32.mrb[0].mxu0
  %1069 = vmatprep.mubr.f32.mxu0 0.0
  %1070 = vmatmul.mubr.f32.gmra.mrb[0].mxu0 %v251
  %v1071 = vpop.f32.mrb[0].mxu0
  %v1072 = vadd.f32 0.0, %v1071
  %v1073 = vpop.f32.mrb[0].mxu0
  %1074 = vmatprep.mubr.f32.mxu0 0.0
  %1075 = vmatmul.mubr.f32.gmra.mrb[0].mxu0 %v254
  %v1076 = vpop.f32.mrb[0].mxu0
  %v1077 = vadd.f32 0.0, %v1076
  %v1078 = vpop.f32.mrb[0].mxu0
  %1079 = vdwg.mxu0
  %1082 = vrot.lane.b32.xlu0 %v991, 112
  %v1083 = vpop.permute.xlu0 %1082
  %1084 = vrot.lane.b32.xlu0 %v992, 112
  %v1085 = vpop.permute.xlu0 %1084
  %v1088 = vadd.f32 %v1062, %v1083
  %v1089 = vadd.f32 %v1067, %v1085
  %1092 = vrot.lane.b32.xlu0 %v1072, 96
  %v1093 = vpop.permute.xlu0 %1092
  %1094 = vrot.lane.b32.xlu0 %v1077, 96
  %v1095 = vpop.permute.xlu0 %1094
  %v1098 = vadd.f32 %v1088, %v1093
  %v1099 = vadd.f32 %v1089, %v1095
  %1100 = vmatprep.subr.mxu0 0.0
  %1101 = vmatpush1.msra.mxu0 %v993
  %1102 = vmatprep.subr.mxu0 0.0
  %1103 = vmatpush1.msra.mxu0 %v994
  %1104 = vmatprep.subr.mxu0 0.0
  %1105 = vmatpush1.msra.mxu0 0.0
  %1106 = vmatprep.subr.mxu0 0.0
  %1107 = vmatpush1.msra.mxu0 0.0
  %1108 = vmatprep.subr.mxu0 0.0
  %1109 = vmatpush1.msra.mxu0 0.0
  %1110 = vmatprep.subr.mxu0 0.0
  %1111 = vmatpush1.msra.mxu0 0.0
  %1112 = vmatprep.subr.mxu0 0.0
  %1113 = vmatpush1.msra.mxu0 0.0
  %1114 = vmatprep.subr.mxu0 0.0
  %1115 = vmatpush1.msra.mxu0 0.0
  %1116 = vmatprep.subr.mxu0 0.0
  %1117 = vmatpush1.msra.mxu0 0.0
  %1118 = vmatprep.subr.mxu0 0.0
  %1119 = vmatpush1.msra.mxu0 0.0
  %1120 = vmatprep.subr.mxu0 0.0
  %1121 = vmatpush1.msra.mxu0 0.0
  %1122 = vmatprep.subr.mxu0 0.0
  %1123 = vmatpush1.msra.mxu0 0.0
  %1124 = vmatprep.subr.mxu0 0.0
  %1125 = vmatpush1.msra.mxu0 0.0
  %1126 = vmatprep.subr.mxu0 0.0
  %1127 = vmatpush1.msra.mxu0 0.0
  %1128 = vmatprep.subr.mxu0 0.0
  %1129 = vmatpush1.msra.mxu0 0.0
  %1130 = vmatprep.subr.mxu0 0.0
  %1131 = vmatpush1.msra.mxu0 0.0
  %1132 = vmatprep.subr.mxu0 0.0
  %1133 = vmatpush1.msra.mxu0 0.0
  %1134 = vmatprep.subr.mxu0 0.0
  %1135 = vmatpush1.msra.mxu0 0.0
  %1136 = vmatprep.subr.mxu0 0.0
  %1137 = vmatpush1.msra.mxu0 0.0
  %1138 = vmatprep.subr.mxu0 0.0
  %1139 = vmatpush1.msra.mxu0 0.0
  %1140 = vmatprep.subr.mxu0 0.0
  %1141 = vmatpush1.msra.mxu0 0.0
  %1142 = vmatprep.subr.mxu0 0.0
  %1143 = vmatpush1.msra.mxu0 0.0
  %1144 = vmatprep.subr.mxu0 0.0
  %1145 = vmatpush1.msra.mxu0 0.0
  %1146 = vmatprep.subr.mxu0 0.0
  %1147 = vmatpush1.msra.mxu0 0.0
  %1148 = vmatprep.subr.mxu0 0.0
  %1149 = vmatpush1.msra.mxu0 0.0
  %1150 = vmatprep.subr.mxu0 0.0
  %1151 = vmatpush1.msra.mxu0 0.0
  %1152 = vmatprep.subr.mxu0 0.0
  %1153 = vmatpush1.msra.mxu0 0.0
  %1154 = vmatprep.subr.mxu0 0.0
  %1155 = vmatpush1.msra.mxu0 0.0
  %1156 = vmatprep.subr.mxu0 0.0
  %1157 = vmatpush1.msra.mxu0 0.0
  %1158 = vmatprep.subr.mxu0 0.0
  %1159 = vmatpush1.msra.mxu0 0.0
  %1160 = vmatprep.subr.mxu0 0.0
  %1161 = vmatpush1.msra.mxu0 0.0
  %1162 = vmatprep.subr.mxu0 0.0
  %1163 = vmatpush1.msra.mxu0 0.0
  %1164 = vmatprep.mubr.f32.mxu0 0.0
  %1165 = vmatmul.mubr.f32.gmra.mrb[0].mxu0 %v362
  %v1166 = vpop.f32.mrb[0].mxu0
  %v1167 = vadd.f32 0.0, %v1166
  %v1168 = vpop.f32.mrb[0].mxu0
  %1169 = vmatprep.mubr.f32.mxu0 0.0
  %1170 = vmatmul.mubr.f32.gmra.mrb[0].mxu0 %v365
  %v1171 = vpop.f32.mrb[0].mxu0
  %v1172 = vadd.f32 0.0, %v1171
  %v1173 = vpop.f32.mrb[0].mxu0
  %1174 = vmatprep.mubr.f32.mxu0 0.0
  %1175 = vmatmul.mubr.f32.gmra.mrb[0].mxu0 %v368
  %v1176 = vpop.f32.mrb[0].mxu0
  %v1177 = vadd.f32 0.0, %v1176
  %v1178 = vpop.f32.mrb[0].mxu0
  %1179 = vmatprep.mubr.f32.mxu0 0.0
  %1180 = vmatmul.mubr.f32.gmra.mrb[0].mxu0 %v371
  %v1181 = vpop.f32.mrb[0].mxu0
  %v1182 = vadd.f32 0.0, %v1181
  %v1183 = vpop.f32.mrb[0].mxu0
  %1184 = vdwg.mxu0
  %1187 = vrot.lane.b32.xlu0 %v993, 112
  %v1188 = vpop.permute.xlu0 %1187
  %1189 = vrot.lane.b32.xlu0 %v994, 112
  %v1190 = vpop.permute.xlu0 %1189
  %v1193 = vadd.f32 %v1167, %v1188
  %v1194 = vadd.f32 %v1172, %v1190
  %1197 = vrot.lane.b32.xlu0 %v1177, 96
  %v1198 = vpop.permute.xlu0 %1197
  %1199 = vrot.lane.b32.xlu0 %v1182, 96
  %v1200 = vpop.permute.xlu0 %1199
  %v1203 = vadd.f32 %v1193, %v1198
  %v1204 = vadd.f32 %v1194, %v1200
  %v1205 = vmax.f32 %v1098, 0.0
  %v1206 = vmax.f32 %v1099, 0.0
  %v1207 = vmax.f32 %v1203, 0.0
  %v1208 = vmax.f32 %v1204, 0.0
  %v1209 = vld [vmem:[%s2 + $0x38] sm:$0xff]
  %v1210 = vld [vmem:[%s2 + $0x40] sm:$0xff]
  %v1211 = vld [vmem:[%s2 + $0x48] sm:$0xff]
  %v1212 = vld [vmem:[%s2 + $0x50] sm:$0xff]
  %1213 = vmatprep.subr.mxu0 0.0
  %1214 = vmatpush1.msra.mxu0 %v1211
  %1215 = vmatprep.subr.mxu0 0.0
  %1216 = vmatpush1.msra.mxu0 %v1212
  %1217 = vmatprep.subr.mxu0 0.0
  %1218 = vmatpush1.msra.mxu0 0.0
  %1219 = vmatprep.subr.mxu0 0.0
  %1220 = vmatpush1.msra.mxu0 0.0
  %1221 = vmatprep.subr.mxu0 0.0
  %1222 = vmatpush1.msra.mxu0 0.0
  %1223 = vmatprep.subr.mxu0 0.0
  %1224 = vmatpush1.msra.mxu0 0.0
  %1225 = vmatprep.subr.mxu0 0.0
  %1226 = vmatpush1.msra.mxu0 0.0
  %1227 = vmatprep.subr.mxu0 0.0
  %1228 = vmatpush1.msra.mxu0 0.0
  %1229 = vmatprep.subr.mxu0 0.0
  %1230 = vmatpush1.msra.mxu0 0.0
  %1231 = vmatprep.subr.mxu0 0.0
  %1232 = vmatpush1.msra.mxu0 0.0
  %1233 = vmatprep.subr.mxu0 0.0
  %1234 = vmatpush1.msra.mxu0 0.0
  %1235 = vmatprep.subr.mxu0 0.0
  %1236 = vmatpush1.msra.mxu0 0.0
  %1237 = vmatprep.subr.mxu0 0.0
  %1238 = vmatpush1.msra.mxu0 0.0
  %1239 = vmatprep.subr.mxu0 0.0
  %1240 = vmatpush1.msra.mxu0 0.0
  %1241 = vmatprep.subr.mxu0 0.0
  %1242 = vmatpush1.msra.mxu0 0.0
  %1243 = vmatprep.subr.mxu0 0.0
  %1244 = vmatpush1.msra.mxu0 0.0
  %1245 = vmatprep.subr.mxu0 0.0
  %1246 = vmatpush1.msra.mxu0 0.0
  %1247 = vmatprep.subr.mxu0 0.0
  %1248 = vmatpush1.msra.mxu0 0.0
  %1249 = vmatprep.subr.mxu0 0.0
  %1250 = vmatpush1.msra.mxu0 0.0
  %1251 = vmatprep.subr.mxu0 0.0
  %1252 = vmatpush1.msra.mxu0 0.0
  %1253 = vmatprep.subr.mxu0 0.0
  %1254 = vmatpush1.msra.mxu0 0.0
  %1255 = vmatprep.subr.mxu0 0.0
  %1256 = vmatpush1.msra.mxu0 0.0
  %1257 = vmatprep.subr.mxu0 0.0
  %1258 = vmatpush1.msra.mxu0 0.0
  %1259 = vmatprep.subr.mxu0 0.0
  %1260 = vmatpush1.msra.mxu0 0.0
  %1261 = vmatprep.subr.mxu0 0.0
  %1262 = vmatpush1.msra.mxu0 0.0
  %1263 = vmatprep.subr.mxu0 0.0
  %1264 = vmatpush1.msra.mxu0 0.0
  %1265 = vmatprep.subr.mxu0 0.0
  %1266 = vmatpush1.msra.mxu0 0.0
  %1267 = vmatprep.subr.mxu0 0.0
  %1268 = vmatpush1.msra.mxu0 0.0
  %1269 = vmatprep.subr.mxu0 0.0
  %1270 = vmatpush1.msra.mxu0 0.0
  %1271 = vmatprep.subr.mxu0 0.0
  %1272 = vmatpush1.msra.mxu0 0.0
  %1273 = vmatprep.subr.mxu0 0.0
  %1274 = vmatpush1.msra.mxu0 0.0
  %1275 = vmatprep.subr.mxu0 0.0
  %1276 = vmatpush1.msra.mxu0 0.0
  %1277 = vmatprep.mubr.f32.mxu0 0.0
  %1278 = vmatmul.mubr.f32.gmra.mrb[0].mxu0 %v490
  %v1279 = vpop.f32.mrb[0].mxu0
  %v1280 = vadd.f32 0.0, %v1279
  %v1281 = vpop.f32.mrb[0].mxu0
  %1282 = vmatprep.mubr.f32.mxu0 0.0
  %1283 = vmatmul.mubr.f32.gmra.mrb[0].mxu0 %v493
  %v1284 = vpop.f32.mrb[0].mxu0
  %v1285 = vadd.f32 0.0, %v1284
  %v1286 = vpop.f32.mrb[0].mxu0
  %1287 = vmatprep.mubr.f32.mxu0 0.0
  %1288 = vmatmul.mubr.f32.gmra.mrb[0].mxu0 %v496
  %v1289 = vpop.f32.mrb[0].mxu0
  %v1290 = vadd.f32 0.0, %v1289
  %v1291 = vpop.f32.mrb[0].mxu0
  %1292 = vmatprep.mubr.f32.mxu0 0.0
  %1293 = vmatmul.mubr.f32.gmra.mrb[0].mxu0 %v499
  %v1294 = vpop.f32.mrb[0].mxu0
  %v1295 = vadd.f32 0.0, %v1294
  %v1296 = vpop.f32.mrb[0].mxu0
  %1297 = vdwg.mxu0
  %v1299 = vsel %vm23, %v1205, 0
  %v1302 = vsel %vm23, %v1206, 0
  %v1305 = vsel %vm23, %v1207, 0
  %v1308 = vsel %vm23, %v1208, 0
  %1310 = vmatprep.subr.mxu0 0.0
  %1311 = vmatpush1.msra.mxu0 %v1209
  %1312 = vmatprep.subr.mxu0 0.0
  %1313 = vmatpush1.msra.mxu0 %v1210
  %1314 = vmatprep.subr.mxu0 0.0
  %1315 = vmatpush1.msra.mxu0 0.0
  %1316 = vmatprep.subr.mxu0 0.0
  %1317 = vmatpush1.msra.mxu0 0.0
  %1318 = vmatprep.subr.mxu0 0.0
  %1319 = vmatpush1.msra.mxu0 0.0
  %1320 = vmatprep.subr.mxu0 0.0
  %1321 = vmatpush1.msra.mxu0 0.0
  %1322 = vmatprep.subr.mxu0 0.0
  %1323 = vmatpush1.msra.mxu0 0.0
  %1324 = vmatprep.subr.mxu0 0.0
  %1325 = vmatpush1.msra.mxu0 0.0
  %1326 = vmatprep.subr.mxu0 0.0
  %1327 = vmatpush1.msra.mxu0 0.0
  %1328 = vmatprep.subr.mxu0 0.0
  %1329 = vmatpush1.msra.mxu0 0.0
  %1330 = vmatprep.subr.mxu0 0.0
  %1331 = vmatpush1.msra.mxu0 0.0
  %1332 = vmatprep.subr.mxu0 0.0
  %1333 = vmatpush1.msra.mxu0 0.0
  %1334 = vmatprep.subr.mxu0 0.0
  %1335 = vmatpush1.msra.mxu0 0.0
  %1336 = vmatprep.subr.mxu0 0.0
  %1337 = vmatpush1.msra.mxu0 0.0
  %1338 = vmatprep.subr.mxu0 0.0
  %1339 = vmatpush1.msra.mxu0 0.0
  %1340 = vmatprep.subr.mxu0 0.0
  %1341 = vmatpush1.msra.mxu0 0.0
  %1342 = vmatprep.subr.mxu0 0.0
  %1343 = vmatpush1.msra.mxu0 0.0
  %1344 = vmatprep.subr.mxu0 0.0
  %1345 = vmatpush1.msra.mxu0 0.0
  %1346 = vmatprep.subr.mxu0 0.0
  %1347 = vmatpush1.msra.mxu0 0.0
  %1348 = vmatprep.subr.mxu0 0.0
  %1349 = vmatpush1.msra.mxu0 0.0
  %1350 = vmatprep.subr.mxu0 0.0
  %1351 = vmatpush1.msra.mxu0 0.0
  %1352 = vmatprep.subr.mxu0 0.0
  %1353 = vmatpush1.msra.mxu0 0.0
  %1354 = vmatprep.subr.mxu0 0.0
  %1355 = vmatpush1.msra.mxu0 0.0
  %1356 = vmatprep.subr.mxu0 0.0
  %1357 = vmatpush1.msra.mxu0 0.0
  %1358 = vmatprep.subr.mxu0 0.0
  %1359 = vmatpush1.msra.mxu0 0.0
  %1360 = vmatprep.subr.mxu0 0.0
  %1361 = vmatpush1.msra.mxu0 0.0
  %1362 = vmatprep.subr.mxu0 0.0
  %1363 = vmatpush1.msra.mxu0 0.0
  %1364 = vmatprep.subr.mxu0 0.0
  %1365 = vmatpush1.msra.mxu0 0.0
  %1366 = vmatprep.subr.mxu0 0.0
  %1367 = vmatpush1.msra.mxu0 0.0
  %1368 = vmatprep.subr.mxu0 0.0
  %1369 = vmatpush1.msra.mxu0 0.0
  %1370 = vmatprep.subr.mxu0 0.0
  %1371 = vmatpush1.msra.mxu0 0.0
  %1372 = vmatprep.subr.mxu0 0.0
  %1373 = vmatpush1.msra.mxu0 0.0
  %1374 = vmatprep.mubr.f32.mxu0 0.0
  %1375 = vmatmul.mubr.f32.gmra.mrb[0].mxu0 %v1299
  %v1376 = vpop.f32.mrb[0].mxu0
  %v1377 = vadd.f32 %v1280, %v1376
  %v1378 = vpop.f32.mrb[0].mxu0
  %1379 = vmatprep.mubr.f32.mxu0 0.0
  %1380 = vmatmul.mubr.f32.gmra.mrb[0].mxu0 %v1302
  %v1381 = vpop.f32.mrb[0].mxu0
  %v1382 = vadd.f32 %v1285, %v1381
  %v1383 = vpop.f32.mrb[0].mxu0
  %1384 = vmatprep.mubr.f32.mxu0 0.0
  %1385 = vmatmul.mubr.f32.gmra.mrb[0].mxu0 %v1305
  %v1386 = vpop.f32.mrb[0].mxu0
  %v1387 = vadd.f32 %v1290, %v1386
  %v1388 = vpop.f32.mrb[0].mxu0
  %1389 = vmatprep.mubr.f32.mxu0 0.0
  %1390 = vmatmul.mubr.f32.gmra.mrb[0].mxu0 %v1308
  %v1391 = vpop.f32.mrb[0].mxu0
  %v1392 = vadd.f32 %v1295, %v1391
  %v1393 = vpop.f32.mrb[0].mxu0
  %1394 = vdwg.mxu0
  %v1395 = vld [vmem:[%s2 + $0x58] sm:$0xff]
  %1396 = vmatprep.subr.mxu0 0.0
  %1397 = vmatpush1.msra.mxu0 %v1395
  %1398 = vmatprep.subr.mxu0 0.0
  %1399 = vmatpush1.msra.mxu0 0.0
  %1400 = vmatprep.subr.mxu0 0.0
  %1401 = vmatpush1.msra.mxu0 0.0
  %1402 = vmatprep.subr.mxu0 0.0
  %1403 = vmatpush1.msra.mxu0 0.0
  %1404 = vmatprep.subr.mxu0 0.0
  %1405 = vmatpush1.msra.mxu0 0.0
  %1406 = vmatprep.subr.mxu0 0.0
  %1407 = vmatpush1.msra.mxu0 0.0
  %1408 = vmatprep.subr.mxu0 0.0
  %1409 = vmatpush1.msra.mxu0 0.0
  %1410 = vmatprep.subr.mxu0 0.0
  %1411 = vmatpush1.msra.mxu0 0.0
  %1412 = vmatprep.subr.mxu0 0.0
  %1413 = vmatpush1.msra.mxu0 0.0
  %1414 = vmatprep.subr.mxu0 0.0
  %1415 = vmatpush1.msra.mxu0 0.0
  %1416 = vmatprep.subr.mxu0 0.0
  %1417 = vmatpush1.msra.mxu0 0.0
  %1418 = vmatprep.subr.mxu0 0.0
  %1419 = vmatpush1.msra.mxu0 0.0
  %1420 = vmatprep.subr.mxu0 0.0
  %1421 = vmatpush1.msra.mxu0 0.0
  %1422 = vmatprep.subr.mxu0 0.0
  %1423 = vmatpush1.msra.mxu0 0.0
  %1424 = vmatprep.subr.mxu0 0.0
  %1425 = vmatpush1.msra.mxu0 0.0
  %1426 = vmatprep.subr.mxu0 0.0
  %1427 = vmatpush1.msra.mxu0 0.0
  %1428 = vmatprep.subr.mxu0 0.0
  %1429 = vmatpush1.msra.mxu0 0.0
  %1430 = vmatprep.subr.mxu0 0.0
  %1431 = vmatpush1.msra.mxu0 0.0
  %1432 = vmatprep.subr.mxu0 0.0
  %1433 = vmatpush1.msra.mxu0 0.0
  %1434 = vmatprep.subr.mxu0 0.0
  %1435 = vmatpush1.msra.mxu0 0.0
  %1436 = vmatprep.subr.mxu0 0.0
  %1437 = vmatpush1.msra.mxu0 0.0
  %1438 = vmatprep.subr.mxu0 0.0
  %1439 = vmatpush1.msra.mxu0 0.0
  %1440 = vmatprep.subr.mxu0 0.0
  %1441 = vmatpush1.msra.mxu0 0.0
  %1442 = vmatprep.subr.mxu0 0.0
  %1443 = vmatpush1.msra.mxu0 0.0
  %1444 = vmatprep.subr.mxu0 0.0
  %1445 = vmatpush1.msra.mxu0 0.0
  %1446 = vmatprep.subr.mxu0 0.0
  %1447 = vmatpush1.msra.mxu0 0.0
  %1448 = vmatprep.subr.mxu0 0.0
  %1449 = vmatpush1.msra.mxu0 0.0
  %1450 = vmatprep.subr.mxu0 0.0
  %1451 = vmatpush1.msra.mxu0 0.0
  %1452 = vmatprep.subr.mxu0 0.0
  %1453 = vmatpush1.msra.mxu0 0.0
  %1454 = vmatprep.subr.mxu0 0.0
  %1455 = vmatpush1.msra.mxu0 0.0
  %1456 = vmatprep.subr.mxu0 0.0
  %1457 = vmatpush1.msra.mxu0 0.0
  %1458 = vmatprep.subr.mxu0 0.0
  %1459 = vmatpush1.msra.mxu0 0.0
  %1460 = vmatprep.mubr.f32.mxu0 0.0
  %1461 = vmatmul.mubr.f32.gmra.mrb[0].mxu0 %v148
  %v1462 = vpop.f32.mrb[0].mxu0
  %v1463 = vadd.f32 0.0, %v1462
  %v1464 = vpop.f32.mrb[0].mxu0
  %1465 = vmatprep.mubr.f32.mxu0 0.0
  %1466 = vmatmul.mubr.f32.gmra.mrb[0].mxu0 %v151
  %v1467 = vpop.f32.mrb[0].mxu0
  %v1468 = vadd.f32 0.0, %v1467
  %v1469 = vpop.f32.mrb[0].mxu0
  %1470 = vmatprep.mubr.f32.mxu0 0.0
  %1471 = vmatmul.mubr.f32.gmra.mrb[0].mxu0 %v154
  %v1472 = vpop.f32.mrb[0].mxu0
  %v1473 = vadd.f32 0.0, %v1472
  %v1474 = vpop.f32.mrb[0].mxu0
  %1475 = vmatprep.mubr.f32.mxu0 0.0
  %1476 = vmatmul.mubr.f32.gmra.mrb[0].mxu0 %v157
  %v1477 = vpop.f32.mrb[0].mxu0
  %v1478 = vadd.f32 0.0, %v1477
  %v1479 = vpop.f32.mrb[0].mxu0
  %1480 = vdwg.mxu0
  %v1481 = vadd.f32 %v1377, %v1463
  %v1482 = vadd.f32 %v1382, %v1468
  %v1483 = vadd.f32 %v1387, %v1473
  %v1484 = vadd.f32 %v1392, %v1478
  %v1485 = vld [vmem:[%s3 + $0x3] sm:$0x1]
  %v1486 = vlaneseq
  %v1487 = vshrl.u32 %v1486, 7
  %v1488 = vsub.s32 0, %v1487
  %v1489 = vrot.slane %v1485, %v1488
  %v1490 = vadd.f32 %v1481, %v1489
  %v1491 = vadd.f32 %v1482, %v1489
  %v1492 = vadd.f32 %v1483, %v1489
  %v1493 = vadd.f32 %v1484, %v1489
  %1494 = vmatprep.subr.mxu0 0.0
  %1495 = vmatpush1.msra.mxu0 %v1490
  %1496 = vmatprep.subr.mxu0 0.0
  %1497 = vmatpush1.msra.mxu0 %v1491
  %1498 = vmatprep.subr.mxu0 0.0
  %1499 = vmatpush1.msra.mxu0 0.0
  %1500 = vmatprep.subr.mxu0 0.0
  %1501 = vmatpush1.msra.mxu0 0.0
  %1502 = vmatprep.subr.mxu0 0.0
  %1503 = vmatpush1.msra.mxu0 0.0
  %1504 = vmatprep.subr.mxu0 0.0
  %1505 = vmatpush1.msra.mxu0 0.0
  %1506 = vmatprep.subr.mxu0 0.0
  %1507 = vmatpush1.msra.mxu0 0.0
  %1508 = vmatprep.subr.mxu0 0.0
  %1509 = vmatpush1.msra.mxu0 0.0
  %1510 = vmatprep.subr.mxu0 0.0
  %1511 = vmatpush1.msra.mxu0 0.0
  %1512 = vmatprep.subr.mxu0 0.0
  %1513 = vmatpush1.msra.mxu0 0.0
  %1514 = vmatprep.subr.mxu0 0.0
  %1515 = vmatpush1.msra.mxu0 0.0
  %1516 = vmatprep.subr.mxu0 0.0
  %1517 = vmatpush1.msra.mxu0 0.0
  %1518 = vmatprep.subr.mxu0 0.0
  %1519 = vmatpush1.msra.mxu0 0.0
  %1520 = vmatprep.subr.mxu0 0.0
  %1521 = vmatpush1.msra.mxu0 0.0
  %1522 = vmatprep.subr.mxu0 0.0
  %1523 = vmatpush1.msra.mxu0 0.0
  %1524 = vmatprep.subr.mxu0 0.0
  %1525 = vmatpush1.msra.mxu0 0.0
  %1526 = vmatprep.subr.mxu0 0.0
  %1527 = vmatpush1.msra.mxu0 0.0
  %1528 = vmatprep.subr.mxu0 0.0
  %1529 = vmatpush1.msra.mxu0 0.0
  %1530 = vmatprep.subr.mxu0 0.0
  %1531 = vmatpush1.msra.mxu0 0.0
  %1532 = vmatprep.subr.mxu0 0.0
  %1533 = vmatpush1.msra.mxu0 0.0
  %1534 = vmatprep.subr.mxu0 0.0
  %1535 = vmatpush1.msra.mxu0 0.0
  %1536 = vmatprep.subr.mxu0 0.0
  %1537 = vmatpush1.msra.mxu0 0.0
  %1538 = vmatprep.subr.mxu0 0.0
  %1539 = vmatpush1.msra.mxu0 0.0
  %1540 = vmatprep.subr.mxu0 0.0
  %1541 = vmatpush1.msra.mxu0 0.0
  %1542 = vmatprep.subr.mxu0 0.0
  %1543 = vmatpush1.msra.mxu0 0.0
  %1544 = vmatprep.subr.mxu0 0.0
  %1545 = vmatpush1.msra.mxu0 0.0
  %1546 = vmatprep.subr.mxu0 0.0
  %1547 = vmatpush1.msra.mxu0 0.0
  %1548 = vmatprep.subr.mxu0 0.0
  %1549 = vmatpush1.msra.mxu0 0.0
  %1550 = vmatprep.subr.mxu0 0.0
  %1551 = vmatpush1.msra.mxu0 0.0
  %1552 = vmatprep.subr.mxu0 0.0
  %1553 = vmatpush1.msra.mxu0 0.0
  %1554 = vmatprep.subr.mxu0 0.0
  %1555 = vmatpush1.msra.mxu0 0.0
  %1556 = vmatprep.subr.mxu0 0.0
  %1557 = vmatpush1.msra.mxu0 0.0
  %1558 = vmatprep.mubr.f32.mxu0 0.0
  %1559 = vmatmul.mubr.f32.gmra.mrb[0].mxu0 %v245
  %v1560 = vpop.f32.mrb[0].mxu0
  %v1561 = vadd.f32 0.0, %v1560
  %v1562 = vpop.f32.mrb[0].mxu0
  %1563 = vmatprep.mubr.f32.mxu0 0.0
  %1564 = vmatmul.mubr.f32.gmra.mrb[0].mxu0 %v248
  %v1565 = vpop.f32.mrb[0].mxu0
  %v1566 = vadd.f32 0.0, %v1565
  %v1567 = vpop.f32.mrb[0].mxu0
  %1568 = vmatprep.mubr.f32.mxu0 0.0
  %1569 = vmatmul.mubr.f32.gmra.mrb[0].mxu0 %v251
  %v1570 = vpop.f32.mrb[0].mxu0
  %v1571 = vadd.f32 0.0, %v1570
  %v1572 = vpop.f32.mrb[0].mxu0
  %1573 = vmatprep.mubr.f32.mxu0 0.0
  %1574 = vmatmul.mubr.f32.gmra.mrb[0].mxu0 %v254
  %v1575 = vpop.f32.mrb[0].mxu0
  %v1576 = vadd.f32 0.0, %v1575
  %v1577 = vpop.f32.mrb[0].mxu0
  %1578 = vdwg.mxu0
  %1581 = vrot.lane.b32.xlu0 %v1490, 120
  %v1582 = vpop.permute.xlu0 %1581
  %1583 = vrot.lane.b32.xlu0 %v1491, 120
  %v1584 = vpop.permute.xlu0 %1583
  %v1587 = vadd.f32 %v1561, %v1582
  %v1588 = vadd.f32 %v1566, %v1584
  %1591 = vrot.lane.b32.xlu0 %v1571, 112
  %v1592 = vpop.permute.xlu0 %1591
  %1593 = vrot.lane.b32.xlu0 %v1576, 112
  %v1594 = vpop.permute.xlu0 %1593
  %v1597 = vadd.f32 %v1587, %v1592
  %v1598 = vadd.f32 %v1588, %v1594
  %1599 = vmatprep.subr.mxu0 0.0
  %1600 = vmatpush1.msra.mxu0 %v1492
  %1601 = vmatprep.subr.mxu0 0.0
  %1602 = vmatpush1.msra.mxu0 %v1493
  %1603 = vmatprep.subr.mxu0 0.0
  %1604 = vmatpush1.msra.mxu0 0.0
  %1605 = vmatprep.subr.mxu0 0.0
  %1606 = vmatpush1.msra.mxu0 0.0
  %1607 = vmatprep.subr.mxu0 0.0
  %1608 = vmatpush1.msra.mxu0 0.0
  %1609 = vmatprep.subr.mxu0 0.0
  %1610 = vmatpush1.msra.mxu0 0.0
  %1611 = vmatprep.subr.mxu0 0.0
  %1612 = vmatpush1.msra.mxu0 0.0
  %1613 = vmatprep.subr.mxu0 0.0
  %1614 = vmatpush1.msra.mxu0 0.0
  %1615 = vmatprep.subr.mxu0 0.0
  %1616 = vmatpush1.msra.mxu0 0.0
  %1617 = vmatprep.subr.mxu0 0.0
  %1618 = vmatpush1.msra.mxu0 0.0
  %1619 = vmatprep.subr.mxu0 0.0
  %1620 = vmatpush1.msra.mxu0 0.0
  %1621 = vmatprep.subr.mxu0 0.0
  %1622 = vmatpush1.msra.mxu0 0.0
  %1623 = vmatprep.subr.mxu0 0.0
  %1624 = vmatpush1.msra.mxu0 0.0
  %1625 = vmatprep.subr.mxu0 0.0
  %1626 = vmatpush1.msra.mxu0 0.0
  %1627 = vmatprep.subr.mxu0 0.0
  %1628 = vmatpush1.msra.mxu0 0.0
  %1629 = vmatprep.subr.mxu0 0.0
  %1630 = vmatpush1.msra.mxu0 0.0
  %1631 = vmatprep.subr.mxu0 0.0
  %1632 = vmatpush1.msra.mxu0 0.0
  %1633 = vmatprep.subr.mxu0 0.0
  %1634 = vmatpush1.msra.mxu0 0.0
  %1635 = vmatprep.subr.mxu0 0.0
  %1636 = vmatpush1.msra.mxu0 0.0
  %1637 = vmatprep.subr.mxu0 0.0
  %1638 = vmatpush1.msra.mxu0 0.0
  %1639 = vmatprep.subr.mxu0 0.0
  %1640 = vmatpush1.msra.mxu0 0.0
  %1641 = vmatprep.subr.mxu0 0.0
  %1642 = vmatpush1.msra.mxu0 0.0
  %1643 = vmatprep.subr.mxu0 0.0
  %1644 = vmatpush1.msra.mxu0 0.0
  %1645 = vmatprep.subr.mxu0 0.0
  %1646 = vmatpush1.msra.mxu0 0.0
  %1647 = vmatprep.subr.mxu0 0.0
  %1648 = vmatpush1.msra.mxu0 0.0
  %1649 = vmatprep.subr.mxu0 0.0
  %1650 = vmatpush1.msra.mxu0 0.0
  %1651 = vmatprep.subr.mxu0 0.0
  %1652 = vmatpush1.msra.mxu0 0.0
  %1653 = vmatprep.subr.mxu0 0.0
  %1654 = vmatpush1.msra.mxu0 0.0
  %1655 = vmatprep.subr.mxu0 0.0
  %1656 = vmatpush1.msra.mxu0 0.0
  %1657 = vmatprep.subr.mxu0 0.0
  %1658 = vmatpush1.msra.mxu0 0.0
  %1659 = vmatprep.subr.mxu0 0.0
  %1660 = vmatpush1.msra.mxu0 0.0
  %1661 = vmatprep.subr.mxu0 0.0
  %1662 = vmatpush1.msra.mxu0 0.0
  %1663 = vmatprep.mubr.f32.mxu0 0.0
  %1664 = vmatmul.mubr.f32.gmra.mrb[0].mxu0 %v362
  %v1665 = vpop.f32.mrb[0].mxu0
  %v1666 = vadd.f32 0.0, %v1665
  %v1667 = vpop.f32.mrb[0].mxu0
  %1668 = vmatprep.mubr.f32.mxu0 0.0
  %1669 = vmatmul.mubr.f32.gmra.mrb[0].mxu0 %v365
  %v1670 = vpop.f32.mrb[0].mxu0
  %v1671 = vadd.f32 0.0, %v1670
  %v1672 = vpop.f32.mrb[0].mxu0
  %1673 = vmatprep.mubr.f32.mxu0 0.0
  %1674 = vmatmul.mubr.f32.gmra.mrb[0].mxu0 %v368
  %v1675 = vpop.f32.mrb[0].mxu0
  %v1676 = vadd.f32 0.0, %v1675
  %v1677 = vpop.f32.mrb[0].mxu0
  %1678 = vmatprep.mubr.f32.mxu0 0.0
  %1679 = vmatmul.mubr.f32.gmra.mrb[0].mxu0 %v371
  %v1680 = vpop.f32.mrb[0].mxu0
  %v1681 = vadd.f32 0.0, %v1680
  %v1682 = vpop.f32.mrb[0].mxu0
  %1683 = vdwg.mxu0
  %1686 = vrot.lane.b32.xlu0 %v1492, 120
  %v1687 = vpop.permute.xlu0 %1686
  %1688 = vrot.lane.b32.xlu0 %v1493, 120
  %v1689 = vpop.permute.xlu0 %1688
  %v1692 = vadd.f32 %v1666, %v1687
  %v1693 = vadd.f32 %v1671, %v1689
  %1696 = vrot.lane.b32.xlu0 %v1676, 112
  %v1697 = vpop.permute.xlu0 %1696
  %1698 = vrot.lane.b32.xlu0 %v1681, 112
  %v1699 = vpop.permute.xlu0 %1698
  %v1702 = vadd.f32 %v1692, %v1697
  %v1703 = vadd.f32 %v1693, %v1699
  %v1704 = vmax.f32 %v1597, 0.0
  %v1705 = vmax.f32 %v1598, 0.0
  %v1706 = vmax.f32 %v1702, 0.0
  %v1707 = vmax.f32 %v1703, 0.0
  %1708 = vst.msk [vmem:[%s4] sm:$0xff] %vm146, %v1704
  %1709 = vst.msk [vmem:[%s4 + $0x8] sm:$0xff] %vm146, %v1705
  %1710 = vst.msk [vmem:[%s4 + $0x10] sm:$0xff] %vm146, %v1706
  %1711 = vst.msk [vmem:[%s4 + $0x18] sm:$0xff] %vm146, %v1707
  // Predicated region
  $region18: #{pyramid_graphsage_forward.1} parent=0 // pred_check
    _
  $region19: #{pyramid_graphsage_forward.1} parent=0 // pred_check_branch
    %1713 = sbr.rel (0) target = $region21
  $region20: #{pyramid_graphsage_forward.1} parent=0 // pred_region
    _
  $region21: #{pyramid_graphsage_forward.1} parent=0 // pred_fallthru
    _
  // Predicated region
  $region22: #{pyramid_graphsage_forward.1} parent=0 // pred_check
    _
  $region23: #{pyramid_graphsage_forward.1} parent=0 // pred_check_branch
    %1715 = sbr.rel (0) target = $region25
  $region24: #{pyramid_graphsage_forward.1} parent=0 // pred_region
    _
  $region25: #{pyramid_graphsage_forward.1} parent=0 // pred_fallthru
    _

</llo_original>
